<compile_context>
chip_gen: v5e
topology: v5e:2x2
jax: 0.10.0
libtpu: 0.0.40
codegen_flags: <defaults>
</compile_context>

<pallas_src>
import math
import numpy as np
import jax
import jax.numpy as jnp
from jax.experimental import pallas as pl
from jax.experimental.pallas import tpu as pltpu

# ---- model config (small, deterministic) ----
D_MODEL = 32
NHEAD = 4
HEAD_DIM = D_MODEL // NHEAD
DIM_FF = 64
EPS = 1e-5
SCALE = 1.0 / math.sqrt(HEAD_DIM)

# ---- 128-lane-aligned section offsets inside the packed slabs ----
SEC = 128
W_SA_QKV = 0 * SEC   # (E, 3E) fused self-attn QKV (Q columns pre-scaled by SCALE)
W_SA_WO  = 1 * SEC   # (E, E)  self-attn out proj
W_CA_Q   = 2 * SEC   # (E, E)  cross-attn Q (pre-scaled by SCALE)
W_CA_KV  = 3 * SEC   # (E, 2E) fused cross-attn KV
W_CA_WO  = 4 * SEC   # (E, E)  cross-attn out proj
W_FF1    = 5 * SEC   # (E, F)  FFN linear1
B_SA_QKV, B_SA_WO, B_CA_Q, B_CA_KV, B_CA_WO, B_FF1, B_FF2 = (i * SEC for i in range(7))


# ---------------- in-kernel helpers ----------------
def _layer_norm(x, gamma, beta):
    mu = jnp.mean(x, axis=-1, keepdims=True)
    var = jnp.mean((x - mu) ** 2, axis=-1, keepdims=True)
    return (x - mu) * jax.lax.rsqrt(var + EPS) * gamma + beta


def _attention(q, k, v, wo, bo):
    """q:(Lq,E) f32 (already scaled), k/v:(Lk,E) f32, wo:(E,E) bf16 (in,out), bo:(1,E) f32."""
    qb = q.astype(jnp.bfloat16)
    kb = k.astype(jnp.bfloat16)
    vb = v.astype(jnp.bfloat16)
    ctx = []
    for h in range(NHEAD):                                   # static unroll over heads
        lo, hi = h * HEAD_DIM, (h + 1) * HEAD_DIM
        s = jax.lax.dot_general(qb[:, lo:hi], kb[:, lo:hi],
                                (((1,), (1,)), ((), ())),
                                preferred_element_type=jnp.float32)
        s = s - jnp.max(s, axis=-1, keepdims=True)           # keep before exp
        p = jnp.exp(s)
        p = p * pl.reciprocal(jnp.sum(p, axis=-1, keepdims=True), approx=True)
        ctx.append(jnp.dot(p.astype(jnp.bfloat16), vb[:, lo:hi],
                           preferred_element_type=jnp.float32))
    ctx = jnp.concatenate(ctx, axis=-1)                      # (Lq, E)
    # single output projection instead of NHEAD tiny K=8 matmuls
    return jnp.dot(ctx.astype(jnp.bfloat16), wo,
                   preferred_element_type=jnp.float32) + bo


# ---------------- the Pallas kernel (one grid step = one batch element) ----------------
def decoder_layer_kernel(x_ref, mem_ref, w_ref, w2_ref, b_ref, ln_ref, o_ref):
    E, F = D_MODEL, DIM_FF
    x = x_ref[0]          # (Lt, E) f32 -- residual stream kept in f32
    mem = mem_ref[0]      # (Lm, E) f32

    # --- self-attention block (dropout1 = identity, eval mode) ---
    qkv = (jnp.dot(x.astype(jnp.bfloat16), w_ref[:, W_SA_QKV:W_SA_QKV + 3 * E],
                   preferred_element_type=jnp.float32)
           + b_ref[:, B_SA_QKV:B_SA_QKV + 3 * E])
    sa = _attention(qkv[:, 0:E], qkv[:, E:2 * E], qkv[:, 2 * E:3 * E],
                    w_ref[:, W_SA_WO:W_SA_WO + E], b_ref[:, B_SA_WO:B_SA_WO + E])
    x = _layer_norm(x + sa, ln_ref[0:1, :], ln_ref[1:2, :])

    # --- cross-attention block (dropout2 = identity) ---
    q = (jnp.dot(x.astype(jnp.bfloat16), w_ref[:, W_CA_Q:W_CA_Q + E],
                 preferred_element_type=jnp.float32)
         + b_ref[:, B_CA_Q:B_CA_Q + E])
    kv = (jnp.dot(mem.astype(jnp.bfloat16), w_ref[:, W_CA_KV:W_CA_KV + 2 * E],
                  preferred_element_type=jnp.float32)
          + b_ref[:, B_CA_KV:B_CA_KV + 2 * E])
    ca = _attention(q, kv[:, 0:E], kv[:, E:2 * E],
                    w_ref[:, W_CA_WO:W_CA_WO + E], b_ref[:, B_CA_WO:B_CA_WO + E])
    x = _layer_norm(x + ca, ln_ref[2:3, :], ln_ref[3:4, :])

    # --- feed-forward block: linear1 -> relu -> linear2 (dropouts = identity) ---
    h = jnp.maximum(
        jnp.dot(x.astype(jnp.bfloat16), w_ref[:, W_FF1:W_FF1 + F],
                preferred_element_type=jnp.float32)
        + b_ref[:, B_FF1:B_FF1 + F], 0.0)
    ff = (jnp.dot(h.astype(jnp.bfloat16), w2_ref[...],
                  preferred_element_type=jnp.float32)
          + b_ref[:, B_FF2:B_FF2 + E])
    x = _layer_norm(x + ff, ln_ref[4:5, :], ln_ref[5:6, :])

    o_ref[0] = x.astype(o_ref.dtype)


# ---------------- one-time parameter packing (outside the per-call path) ----------------
def pack_params(p):
    E, F = D_MODEL, DIM_FF
    f32 = jnp.float32

    def pad128_cols(a):   # pad lane axis of a 2-D section to 128
        return jnp.pad(a, ((0, 0), (0, SEC - a.shape[1])))

    def pad128_vec(v):    # pad a 1-D bias section to 128
        return jnp.pad(v, (0, SEC - v.shape[0]))

    # fold SCALE into the Q columns / Q bias
    q_scale = jnp.concatenate([jnp.full((E,), SCALE, f32),
                               jnp.ones((2 * E,), f32)])

    w_slab = jnp.concatenate([
        pad128_cols(p['sa_in_w'].T.astype(f32) * q_scale[None, :]),   # sec 0: fused QKV
        pad128_cols(p['sa_out_w'].T.astype(f32)),                     # sec 1
        pad128_cols(p['ca_in_w'][:E].T.astype(f32) * SCALE),          # sec 2: cross Q
        pad128_cols(p['ca_in_w'][E:].T.astype(f32)),                  # sec 3: cross KV
        pad128_cols(p['ca_out_w'].T.astype(f32)),                     # sec 4
        pad128_cols(p['w1'].T.astype(f32)),                           # sec 5
    ], axis=1).astype(jnp.bfloat16)                                   # (E, 6*128)

    b_slab = jnp.concatenate([
        pad128_vec(p['sa_in_b'].astype(f32) * q_scale),
        pad128_vec(p['sa_out_b']),
        pad128_vec(p['ca_in_b'][:E].astype(f32) * SCALE),
        pad128_vec(p['ca_in_b'][E:]),
        pad128_vec(p['ca_out_b']),
        pad128_vec(p['b1']),
        pad128_vec(p['b2']),
    ]).reshape(1, -1).astype(f32)                                     # (1, 7*128)

    ln_slab = jnp.stack([p['ln1_w'], p['ln1_b'],
                         p['ln2_w'], p['ln2_b'],
                         p['ln3_w'], p['ln3_b']]).astype(f32)         # (6, E)

    w2 = p['w2'].T.astype(jnp.bfloat16)                               # (F, E)
    return {'w': w_slab, 'w2': w2, 'b': b_slab, 'ln': ln_slab}


# ---------------- jitted apply (single dispatch) ----------------
@jax.jit
def transformer_decoder_layer(tgt, memory, packed):
    """tgt: (Lt, B, E), memory: (Lm, B, E)  (PyTorch batch_first=False)."""
    Lt, B, E = tgt.shape
    Lm = memory.shape[0]
    F = DIM_FF

    # batch-major blocks: each grid step owns one batch -> no attention masks needed.
    tgt_b = jnp.transpose(tgt.astype(jnp.float32), (1, 0, 2))     # (B, Lt, E)
    mem_b = jnp.transpose(memory.astype(jnp.float32), (1, 0, 2))  # (B, Lm, E)

    flops = 2 * B * (Lt * E * 3 * E            # fused self QKV
                     + 3 * Lt * E * E          # sa out proj, ca q, ca out proj
                     + Lm * E * 2 * E          # fused cross KV
                     + 2 * Lt * Lt * E         # self scores + pv
                     + 2 * Lt * Lm * E         # cross scores + pv
                     + 2 * Lt * E * F)         # FFN
    transcendentals = B * (NHEAD * (Lt * Lt + Lt * Lm) + 3 * Lt)
    bytes_accessed = int(4 * (2 * Lt * B * E + Lm * B * E)
                         + 2 * (packed['w'].size + packed['w2'].size)
                         + 4 * (packed['b'].size + packed['ln'].size))

    const_map = lambda b: (0, 0)   # weight slabs: same block every step -> DMA'd once
    out_b = pl.pallas_call(
        decoder_layer_kernel,
        out_shape=jax.ShapeDtypeStruct((B, Lt, E), jnp.float32),
        grid=(B,),
        in_specs=[
            pl.BlockSpec((1, Lt, E), lambda b: (b, 0, 0)),
            pl.BlockSpec((1, Lm, E), lambda b: (b, 0, 0)),
            pl.BlockSpec(packed['w'].shape, const_map),
            pl.BlockSpec(packed['w2'].shape, const_map),
            pl.BlockSpec(packed['b'].shape, const_map),
            pl.BlockSpec(packed['ln'].shape, const_map),
        ],
        out_specs=pl.BlockSpec((1, Lt, E), lambda b: (b, 0, 0)),
        compiler_params=pltpu.CompilerParams(
            dimension_semantics=("parallel",)),   # v7x: batch axis feeds both TCs
        cost_estimate=pl.CostEstimate(flops=flops,
                                      transcendentals=transcendentals,
                                      bytes_accessed=bytes_accessed),
    )(tgt_b, mem_b, packed['w'], packed['w2'], packed['b'], packed['ln'])

    return jnp.transpose(out_b, (1, 0, 2))        # back to (Lt, B, E)


# ---------------- deterministic parameter init ----------------
def init_params(key):
    ks = jax.random.split(key, 12)
    n = lambda k, shape, s=0.05: (s * jax.random.normal(k, shape)).astype(jnp.float32)
    E, F = D_MODEL, DIM_FF
    return {
        'sa_in_w': n(ks[0], (3 * E, E)), 'sa_in_b': n(ks[1], (3 * E,)),
        'sa_out_w': n(ks[2], (E, E)),    'sa_out_b': n(ks[3], (E,)),
        'ca_in_w': n(ks[4], (3 * E, E)), 'ca_in_b': n(ks[5], (3 * E,)),
        'ca_out_w': n(ks[6], (E, E)),    'ca_out_b': n(ks[7], (E,)),
        'w1': n(ks[8], (F, E)), 'b1': n(ks[9], (F,)),
        'w2': n(ks[10], (E, F)), 'b2': n(ks[11], (E,)),
        'ln1_w': jnp.ones((E,), jnp.float32), 'ln1_b': jnp.zeros((E,), jnp.float32),
        'ln2_w': jnp.ones((E,), jnp.float32), 'ln2_b': jnp.zeros((E,), jnp.float32),
        'ln3_w': jnp.ones((E,), jnp.float32), 'ln3_b': jnp.zeros((E,), jnp.float32),
    }


# ---------------- pure-JAX reference (PyTorch semantics, eval mode, f32) ----------------
def ref_decoder_layer(tgt, memory, p):
    E = D_MODEL

    def ln(x, w, b):
        mu = x.mean(-1, keepdims=True)
        var = ((x - mu) ** 2).mean(-1, keepdims=True)
        return (x - mu) / jnp.sqrt(var + EPS) * w + b

    def mha(q_in, kv_in, in_w, in_b, out_w, out_b):
        wq, wk, wv = in_w[:E], in_w[E:2 * E], in_w[2 * E:]
        bq, bk, bv = in_b[:E], in_b[E:2 * E], in_b[2 * E:]
        q = q_in @ wq.T + bq
        k = kv_in @ wk.T + bk
        v = kv_in @ wv.T + bv
        Lq, B, _ = q.shape
        Lk = k.shape[0]
        qh = q.reshape(Lq, B, NHEAD, HEAD_DIM)
        kh = k.reshape(Lk, B, NHEAD, HEAD_DIM)
        vh = v.reshape(Lk, B, NHEAD, HEAD_DIM)
        s = jnp.einsum('qbhd,kbhd->bhqk', qh, kh) * SCALE
        a = jax.nn.softmax(s, axis=-1)
        ctx = jnp.einsum('bhqk,kbhd->qbhd', a, vh).reshape(Lq, B, E)
        return ctx @ out_w.T + out_b

    x = tgt
    x = ln(x + mha(x, x, p['sa_in_w'], p['sa_in_b'], p['sa_out_w'], p['sa_out_b']),
           p['ln1_w'], p['ln1_b'])
    x = ln(x + mha(x, memory, p['ca_in_w'], p['ca_in_b'], p['ca_out_w'], p['ca_out_b']),
           p['ln2_w'], p['ln2_b'])
    h = jax.nn.relu(x @ p['w1'].T + p['b1'])
    ff = h @ p['w2'].T + p['b2']
    x = ln(x + ff, p['ln3_w'], p['ln3_b'])
    return x


if __name__ == "__main__":
    key = jax.random.PRNGKey(0)
    k_tgt, k_mem, k_par = jax.random.split(key, 3)

    Lt, Lm, B = 8, 10, 2
    tgt = jax.random.normal(k_tgt, (Lt, B, D_MODEL), dtype=jnp.float32)
    memory = jax.random.normal(k_mem, (Lm, B, D_MODEL), dtype=jnp.float32)
    params = init_params(k_par)

    packed = pack_params(params)                 # once, outside the per-call path

    out = transformer_decoder_layer(tgt, memory, packed)
    out = jax.block_until_ready(out)

    ref = ref_decoder_layer(tgt, memory, params)
    # bf16 MXU operands + approx reciprocal -> looser tolerance than pure-f32
    np.testing.assert_allclose(np.asarray(out), np.asarray(ref), rtol=2e-2, atol=2e-2)

    print("KERNEL_OK")
</pallas_src>

<mosaic_0001>
module attributes {stable_mosaic.version = 11 : i64} {
  func.func @decoder_layer_kernel(%arg0: i32, %arg1: memref<1x8x32xf32, #tpu.memory_space<vmem>>, %arg2: memref<1x10x32xf32, #tpu.memory_space<vmem>>, %arg3: memref<32x768xbf16, #tpu.memory_space<vmem>>, %arg4: memref<64x32xbf16, #tpu.memory_space<vmem>>, %arg5: memref<1x896xf32, #tpu.memory_space<vmem>>, %arg6: memref<6x32xf32, #tpu.memory_space<vmem>>, %arg7: memref<1x8x32xf32, #tpu.memory_space<vmem>>) attributes {dimension_semantics = [#tpu.dimension_semantics<parallel>], iteration_bounds = array<i64: 2>, scalar_prefetch = 0 : i64, scratch_operands = 0 : i64, tpu.core_type = #tpu.core_type<tc>, window_params = [{transform_indices = @transform_0, window_bounds = array<i64: 1, 8, 32>}, {transform_indices = @transform_1, window_bounds = array<i64: 1, 10, 32>}, {pipeline_mode = #tpu.pipeline_mode<synchronous>, transform_indices = @transform_2, window_bounds = array<i64: 32, 768>}, {pipeline_mode = #tpu.pipeline_mode<synchronous>, transform_indices = @transform_3, window_bounds = array<i64: 64, 32>}, {pipeline_mode = #tpu.pipeline_mode<synchronous>, transform_indices = @transform_4, window_bounds = array<i64: 1, 896>}, {pipeline_mode = #tpu.pipeline_mode<synchronous>, transform_indices = @transform_5, window_bounds = array<i64: 6, 32>}, {transform_indices = @transform_6, window_bounds = array<i64: 1, 8, 32>}]} {
    %c0 = arith.constant 0 : index
    %c0_0 = arith.constant 0 : index
    %c0_1 = arith.constant 0 : index
    %0 = vector.load %arg1[%c0, %c0_0, %c0_1] : memref<1x8x32xf32, #tpu.memory_space<vmem>>, vector<1x8x32xf32>
    %1 = vector.shape_cast %0 : vector<1x8x32xf32> to vector<8x32xf32>
    %c0_2 = arith.constant 0 : index
    %c0_3 = arith.constant 0 : index
    %c0_4 = arith.constant 0 : index
    %2 = vector.load %arg2[%c0_2, %c0_3, %c0_4] : memref<1x10x32xf32, #tpu.memory_space<vmem>>, vector<1x10x32xf32>
    %3 = vector.shape_cast %2 : vector<1x10x32xf32> to vector<10x32xf32>
    %4 = arith.truncf %1 : vector<8x32xf32> to vector<8x32xbf16>
    %c0_5 = arith.constant 0 : index
    %c0_6 = arith.constant 0 : index
    %5 = vector.load %arg3[%c0_5, %c0_6] : memref<32x768xbf16, #tpu.memory_space<vmem>>, vector<32x96xbf16>
    %cst = arith.constant dense<0.000000e+00> : vector<8x96xf32>
    %6 = tpu.matmul %4, %5, %cst {dimension_numbers = #tpu.dot_dimension_numbers<[1], [0], [0], [1], [0, 0, 1, 1], [], []>} : vector<8x32xbf16>, vector<32x96xbf16>, vector<8x96xf32> -> vector<8x96xf32>
    %c0_7 = arith.constant 0 : index
    %c0_8 = arith.constant 0 : index
    %7 = vector.load %arg5[%c0_7, %c0_8] : memref<1x896xf32, #tpu.memory_space<vmem>>, vector<1x96xf32>
    %8 = vector.broadcast %7 : vector<1x96xf32> to vector<8x96xf32>
    %9 = arith.addf %6, %8 : vector<8x96xf32>
    %10 = vector.extract_strided_slice %9 {offsets = [0, 0], sizes = [8, 32], strides = [1, 1]} : vector<8x96xf32> to vector<8x32xf32>
    %11 = vector.extract_strided_slice %9 {offsets = [0, 32], sizes = [8, 32], strides = [1, 1]} : vector<8x96xf32> to vector<8x32xf32>
    %12 = vector.extract_strided_slice %9 {offsets = [0, 64], sizes = [8, 32], strides = [1, 1]} : vector<8x96xf32> to vector<8x32xf32>
    %c0_9 = arith.constant 0 : index
    %c128 = arith.constant 128 : index
    %13 = vector.load %arg3[%c0_9, %c128] : memref<32x768xbf16, #tpu.memory_space<vmem>>, vector<32x32xbf16>
    %c0_10 = arith.constant 0 : index
    %c128_11 = arith.constant 128 : index
    %14 = vector.load %arg5[%c0_10, %c128_11] : memref<1x896xf32, #tpu.memory_space<vmem>>, vector<1x32xf32>
    %15 = arith.truncf %10 : vector<8x32xf32> to vector<8x32xbf16>
    %16 = arith.truncf %11 : vector<8x32xf32> to vector<8x32xbf16>
    %17 = arith.truncf %12 : vector<8x32xf32> to vector<8x32xbf16>
    %18 = vector.extract_strided_slice %15 {offsets = [0, 0], sizes = [8, 8], strides = [1, 1]} : vector<8x32xbf16> to vector<8x8xbf16>
    %19 = vector.extract_strided_slice %16 {offsets = [0, 0], sizes = [8, 8], strides = [1, 1]} : vector<8x32xbf16> to vector<8x8xbf16>
    %cst_12 = arith.constant dense<0.000000e+00> : vector<8x8xf32>
    %20 = tpu.matmul %18, %19, %cst_12 {dimension_numbers = #tpu.dot_dimension_numbers<[1], [1], [0], [0], [0, 0, 1, 0], [], []>} : vector<8x8xbf16>, vector<8x8xbf16>, vector<8x8xf32> -> vector<8x8xf32>
    %cst_13 = arith.constant dense<0xFF800000> : vector<8xf32>
    %21 = vector.multi_reduction <maximumf>, %20, %cst_13 [1] : vector<8x8xf32> to vector<8xf32>
    %22 = vector.shape_cast %21 : vector<8xf32> to vector<8x1xf32>
    %23 = vector.broadcast %22 : vector<8x1xf32> to vector<8x8xf32>
    %24 = arith.subf %20, %23 : vector<8x8xf32>
    %25 = math.exp %24 : vector<8x8xf32>
    %cst_14 = arith.constant dense<0.000000e+00> : vector<8xf32>
    %26 = vector.multi_reduction <add>, %25, %cst_14 [1] : vector<8x8xf32> to vector<8xf32>
    %27 = vector.shape_cast %26 : vector<8xf32> to vector<8x1xf32>
    %28 = tpu.reciprocal %27 {approx = true} : vector<8x1xf32> -> vector<8x1xf32>
    %29 = vector.broadcast %28 : vector<8x1xf32> to vector<8x8xf32>
    %30 = arith.mulf %25, %29 : vector<8x8xf32>
    %31 = arith.truncf %30 : vector<8x8xf32> to vector<8x8xbf16>
    %32 = vector.extract_strided_slice %17 {offsets = [0, 0], sizes = [8, 8], strides = [1, 1]} : vector<8x32xbf16> to vector<8x8xbf16>
    %cst_15 = arith.constant dense<0.000000e+00> : vector<8x8xf32>
    %33 = tpu.matmul %31, %32, %cst_15 {dimension_numbers = #tpu.dot_dimension_numbers<[1], [0], [0], [1], [0, 0, 1, 1], [], []>} : vector<8x8xbf16>, vector<8x8xbf16>, vector<8x8xf32> -> vector<8x8xf32>
    %34 = vector.extract_strided_slice %15 {offsets = [0, 8], sizes = [8, 8], strides = [1, 1]} : vector<8x32xbf16> to vector<8x8xbf16>
    %35 = vector.extract_strided_slice %16 {offsets = [0, 8], sizes = [8, 8], strides = [1, 1]} : vector<8x32xbf16> to vector<8x8xbf16>
    %cst_16 = arith.constant dense<0.000000e+00> : vector<8x8xf32>
    %36 = tpu.matmul %34, %35, %cst_16 {dimension_numbers = #tpu.dot_dimension_numbers<[1], [1], [0], [0], [0, 0, 1, 0], [], []>} : vector<8x8xbf16>, vector<8x8xbf16>, vector<8x8xf32> -> vector<8x8xf32>
    %cst_17 = arith.constant dense<0xFF800000> : vector<8xf32>
    %37 = vector.multi_reduction <maximumf>, %36, %cst_17 [1] : vector<8x8xf32> to vector<8xf32>
    %38 = vector.shape_cast %37 : vector<8xf32> to vector<8x1xf32>
    %39 = vector.broadcast %38 : vector<8x1xf32> to vector<8x8xf32>
    %40 = arith.subf %36, %39 : vector<8x8xf32>
    %41 = math.exp %40 : vector<8x8xf32>
    %cst_18 = arith.constant dense<0.000000e+00> : vector<8xf32>
    %42 = vector.multi_reduction <add>, %41, %cst_18 [1] : vector<8x8xf32> to vector<8xf32>
    %43 = vector.shape_cast %42 : vector<8xf32> to vector<8x1xf32>
    %44 = tpu.reciprocal %43 {approx = true} : vector<8x1xf32> -> vector<8x1xf32>
    %45 = vector.broadcast %44 : vector<8x1xf32> to vector<8x8xf32>
    %46 = arith.mulf %41, %45 : vector<8x8xf32>
    %47 = arith.truncf %46 : vector<8x8xf32> to vector<8x8xbf16>
    %48 = vector.extract_strided_slice %17 {offsets = [0, 8], sizes = [8, 8], strides = [1, 1]} : vector<8x32xbf16> to vector<8x8xbf16>
    %cst_19 = arith.constant dense<0.000000e+00> : vector<8x8xf32>
    %49 = tpu.matmul %47, %48, %cst_19 {dimension_numbers = #tpu.dot_dimension_numbers<[1], [0], [0], [1], [0, 0, 1, 1], [], []>} : vector<8x8xbf16>, vector<8x8xbf16>, vector<8x8xf32> -> vector<8x8xf32>
    %50 = vector.extract_strided_slice %15 {offsets = [0, 16], sizes = [8, 8], strides = [1, 1]} : vector<8x32xbf16> to vector<8x8xbf16>
    %51 = vector.extract_strided_slice %16 {offsets = [0, 16], sizes = [8, 8], strides = [1, 1]} : vector<8x32xbf16> to vector<8x8xbf16>
    %cst_20 = arith.constant dense<0.000000e+00> : vector<8x8xf32>
    %52 = tpu.matmul %50, %51, %cst_20 {dimension_numbers = #tpu.dot_dimension_numbers<[1], [1], [0], [0], [0, 0, 1, 0], [], []>} : vector<8x8xbf16>, vector<8x8xbf16>, vector<8x8xf32> -> vector<8x8xf32>
    %cst_21 = arith.constant dense<0xFF800000> : vector<8xf32>
    %53 = vector.multi_reduction <maximumf>, %52, %cst_21 [1] : vector<8x8xf32> to vector<8xf32>
    %54 = vector.shape_cast %53 : vector<8xf32> to vector<8x1xf32>
    %55 = vector.broadcast %54 : vector<8x1xf32> to vector<8x8xf32>
    %56 = arith.subf %52, %55 : vector<8x8xf32>
    %57 = math.exp %56 : vector<8x8xf32>
    %cst_22 = arith.constant dense<0.000000e+00> : vector<8xf32>
    %58 = vector.multi_reduction <add>, %57, %cst_22 [1] : vector<8x8xf32> to vector<8xf32>
    %59 = vector.shape_cast %58 : vector<8xf32> to vector<8x1xf32>
    %60 = tpu.reciprocal %59 {approx = true} : vector<8x1xf32> -> vector<8x1xf32>
    %61 = vector.broadcast %60 : vector<8x1xf32> to vector<8x8xf32>
    %62 = arith.mulf %57, %61 : vector<8x8xf32>
    %63 = arith.truncf %62 : vector<8x8xf32> to vector<8x8xbf16>
    %64 = vector.extract_strided_slice %17 {offsets = [0, 16], sizes = [8, 8], strides = [1, 1]} : vector<8x32xbf16> to vector<8x8xbf16>
    %cst_23 = arith.constant dense<0.000000e+00> : vector<8x8xf32>
    %65 = tpu.matmul %63, %64, %cst_23 {dimension_numbers = #tpu.dot_dimension_numbers<[1], [0], [0], [1], [0, 0, 1, 1], [], []>} : vector<8x8xbf16>, vector<8x8xbf16>, vector<8x8xf32> -> vector<8x8xf32>
    %66 = vector.extract_strided_slice %15 {offsets = [0, 24], sizes = [8, 8], strides = [1, 1]} : vector<8x32xbf16> to vector<8x8xbf16>
    %67 = vector.extract_strided_slice %16 {offsets = [0, 24], sizes = [8, 8], strides = [1, 1]} : vector<8x32xbf16> to vector<8x8xbf16>
    %cst_24 = arith.constant dense<0.000000e+00> : vector<8x8xf32>
    %68 = tpu.matmul %66, %67, %cst_24 {dimension_numbers = #tpu.dot_dimension_numbers<[1], [1], [0], [0], [0, 0, 1, 0], [], []>} : vector<8x8xbf16>, vector<8x8xbf16>, vector<8x8xf32> -> vector<8x8xf32>
    %cst_25 = arith.constant dense<0xFF800000> : vector<8xf32>
    %69 = vector.multi_reduction <maximumf>, %68, %cst_25 [1] : vector<8x8xf32> to vector<8xf32>
    %70 = vector.shape_cast %69 : vector<8xf32> to vector<8x1xf32>
    %71 = vector.broadcast %70 : vector<8x1xf32> to vector<8x8xf32>
    %72 = arith.subf %68, %71 : vector<8x8xf32>
    %73 = math.exp %72 : vector<8x8xf32>
    %cst_26 = arith.constant dense<0.000000e+00> : vector<8xf32>
    %74 = vector.multi_reduction <add>, %73, %cst_26 [1] : vector<8x8xf32> to vector<8xf32>
    %75 = vector.shape_cast %74 : vector<8xf32> to vector<8x1xf32>
    %76 = tpu.reciprocal %75 {approx = true} : vector<8x1xf32> -> vector<8x1xf32>
    %77 = vector.broadcast %76 : vector<8x1xf32> to vector<8x8xf32>
    %78 = arith.mulf %73, %77 : vector<8x8xf32>
    %79 = arith.truncf %78 : vector<8x8xf32> to vector<8x8xbf16>
    %80 = vector.extract_strided_slice %17 {offsets = [0, 24], sizes = [8, 8], strides = [1, 1]} : vector<8x32xbf16> to vector<8x8xbf16>
    %cst_27 = arith.constant dense<0.000000e+00> : vector<8x8xf32>
    %81 = tpu.matmul %79, %80, %cst_27 {dimension_numbers = #tpu.dot_dimension_numbers<[1], [0], [0], [1], [0, 0, 1, 1], [], []>} : vector<8x8xbf16>, vector<8x8xbf16>, vector<8x8xf32> -> vector<8x8xf32>
    %82 = tpu.concatenate %33, %49, %65, %81 in 1 : vector<8x8xf32>, vector<8x8xf32>, vector<8x8xf32>, vector<8x8xf32> -> vector<8x32xf32>
    %83 = arith.truncf %82 : vector<8x32xf32> to vector<8x32xbf16>
    %cst_28 = arith.constant dense<0.000000e+00> : vector<8x32xf32>
    %84 = tpu.matmul %83, %13, %cst_28 {dimension_numbers = #tpu.dot_dimension_numbers<[1], [0], [0], [1], [0, 0, 1, 1], [], []>} : vector<8x32xbf16>, vector<32x32xbf16>, vector<8x32xf32> -> vector<8x32xf32>
    %85 = vector.broadcast %14 : vector<1x32xf32> to vector<8x32xf32>
    %86 = arith.addf %84, %85 : vector<8x32xf32>
    %87 = arith.addf %1, %86 : vector<8x32xf32>
    %c0_29 = arith.constant 0 : index
    %c0_30 = arith.constant 0 : index
    %88 = vector.load %arg6[%c0_29, %c0_30] : memref<6x32xf32, #tpu.memory_space<vmem>>, vector<1x32xf32>
    %c1 = arith.constant 1 : index
    %c0_31 = arith.constant 0 : index
    %89 = vector.load %arg6[%c1, %c0_31] : memref<6x32xf32, #tpu.memory_space<vmem>>, vector<1x32xf32>
    %cst_32 = arith.constant dense<0.000000e+00> : vector<8xf32>
    %90 = vector.multi_reduction <add>, %87, %cst_32 [1] : vector<8x32xf32> to vector<8xf32>
    %91 = vector.shape_cast %90 : vector<8xf32> to vector<8x1xf32>
    %cst_33 = arith.constant 3.200000e+01 : f32
    %92 = vector.broadcast %cst_33 : f32 to vector<8x1xf32>
    %93 = arith.divf %91, %92 : vector<8x1xf32>
    %94 = vector.broadcast %93 : vector<8x1xf32> to vector<8x32xf32>
    %95 = arith.subf %87, %94 : vector<8x32xf32>
    %96 = arith.mulf %95, %95 : vector<8x32xf32>
    %cst_34 = arith.constant dense<0.000000e+00> : vector<8xf32>
    %97 = vector.multi_reduction <add>, %96, %cst_34 [1] : vector<8x32xf32> to vector<8xf32>
    %98 = vector.shape_cast %97 : vector<8xf32> to vector<8x1xf32>
    %cst_35 = arith.constant 3.200000e+01 : f32
    %99 = vector.broadcast %cst_35 : f32 to vector<8x1xf32>
    %100 = arith.divf %98, %99 : vector<8x1xf32>
    %101 = vector.broadcast %93 : vector<8x1xf32> to vector<8x32xf32>
    %102 = arith.subf %87, %101 : vector<8x32xf32>
    %cst_36 = arith.constant 9.99999974E-6 : f32
    %103 = vector.broadcast %cst_36 : f32 to vector<8x1xf32>
    %104 = arith.addf %100, %103 : vector<8x1xf32>
    %105 = math.rsqrt %104 : vector<8x1xf32>
    %106 = vector.broadcast %105 : vector<8x1xf32> to vector<8x32xf32>
    %107 = arith.mulf %102, %106 : vector<8x32xf32>
    %108 = vector.broadcast %88 : vector<1x32xf32> to vector<8x32xf32>
    %109 = arith.mulf %107, %108 : vector<8x32xf32>
    %110 = vector.broadcast %89 : vector<1x32xf32> to vector<8x32xf32>
    %111 = arith.addf %109, %110 : vector<8x32xf32>
    %112 = arith.truncf %111 : vector<8x32xf32> to vector<8x32xbf16>
    %c0_37 = arith.constant 0 : index
    %c256 = arith.constant 256 : index
    %113 = vector.load %arg3[%c0_37, %c256] : memref<32x768xbf16, #tpu.memory_space<vmem>>, vector<32x32xbf16>
    %cst_38 = arith.constant dense<0.000000e+00> : vector<8x32xf32>
    %114 = tpu.matmul %112, %113, %cst_38 {dimension_numbers = #tpu.dot_dimension_numbers<[1], [0], [0], [1], [0, 0, 1, 1], [], []>} : vector<8x32xbf16>, vector<32x32xbf16>, vector<8x32xf32> -> vector<8x32xf32>
    %c0_39 = arith.constant 0 : index
    %c256_40 = arith.constant 256 : index
    %115 = vector.load %arg5[%c0_39, %c256_40] : memref<1x896xf32, #tpu.memory_space<vmem>>, vector<1x32xf32>
    %116 = vector.broadcast %115 : vector<1x32xf32> to vector<8x32xf32>
    %117 = arith.addf %114, %116 : vector<8x32xf32>
    %118 = arith.truncf %3 : vector<10x32xf32> to vector<10x32xbf16>
    %c0_41 = arith.constant 0 : index
    %c384 = arith.constant 384 : index
    %119 = vector.load %arg3[%c0_41, %c384] : memref<32x768xbf16, #tpu.memory_space<vmem>>, vector<32x64xbf16>
    %cst_42 = arith.constant dense<0.000000e+00> : vector<10x64xf32>
    %120 = tpu.matmul %118, %119, %cst_42 {dimension_numbers = #tpu.dot_dimension_numbers<[1], [0], [0], [1], [0, 0, 1, 1], [], []>} : vector<10x32xbf16>, vector<32x64xbf16>, vector<10x64xf32> -> vector<10x64xf32>
    %c0_43 = arith.constant 0 : index
    %c384_44 = arith.constant 384 : index
    %121 = vector.load %arg5[%c0_43, %c384_44] : memref<1x896xf32, #tpu.memory_space<vmem>>, vector<1x64xf32>
    %122 = vector.broadcast %121 : vector<1x64xf32> to vector<10x64xf32>
    %123 = arith.addf %120, %122 : vector<10x64xf32>
    %124 = vector.extract_strided_slice %123 {offsets = [0, 0], sizes = [10, 32], strides = [1, 1]} : vector<10x64xf32> to vector<10x32xf32>
    %125 = vector.extract_strided_slice %123 {offsets = [0, 32], sizes = [10, 32], strides = [1, 1]} : vector<10x64xf32> to vector<10x32xf32>
    %c0_45 = arith.constant 0 : index
    %c512 = arith.constant 512 : index
    %126 = vector.load %arg3[%c0_45, %c512] : memref<32x768xbf16, #tpu.memory_space<vmem>>, vector<32x32xbf16>
    %c0_46 = arith.constant 0 : index
    %c512_47 = arith.constant 512 : index
    %127 = vector.load %arg5[%c0_46, %c512_47] : memref<1x896xf32, #tpu.memory_space<vmem>>, vector<1x32xf32>
    %128 = arith.truncf %117 : vector<8x32xf32> to vector<8x32xbf16>
    %129 = arith.truncf %124 : vector<10x32xf32> to vector<10x32xbf16>
    %130 = arith.truncf %125 : vector<10x32xf32> to vector<10x32xbf16>
    %131 = vector.extract_strided_slice %128 {offsets = [0, 0], sizes = [8, 8], strides = [1, 1]} : vector<8x32xbf16> to vector<8x8xbf16>
    %132 = vector.extract_strided_slice %129 {offsets = [0, 0], sizes = [10, 8], strides = [1, 1]} : vector<10x32xbf16> to vector<10x8xbf16>
    %cst_48 = arith.constant dense<0.000000e+00> : vector<8x10xf32>
    %133 = tpu.matmul %131, %132, %cst_48 {dimension_numbers = #tpu.dot_dimension_numbers<[1], [1], [0], [0], [0, 0, 1, 0], [], []>} : vector<8x8xbf16>, vector<10x8xbf16>, vector<8x10xf32> -> vector<8x10xf32>
    %cst_49 = arith.constant dense<0xFF800000> : vector<8xf32>
    %134 = vector.multi_reduction <maximumf>, %133, %cst_49 [1] : vector<8x10xf32> to vector<8xf32>
    %135 = vector.shape_cast %134 : vector<8xf32> to vector<8x1xf32>
    %136 = vector.broadcast %135 : vector<8x1xf32> to vector<8x10xf32>
    %137 = arith.subf %133, %136 : vector<8x10xf32>
    %138 = math.exp %137 : vector<8x10xf32>
    %cst_50 = arith.constant dense<0.000000e+00> : vector<8xf32>
    %139 = vector.multi_reduction <add>, %138, %cst_50 [1] : vector<8x10xf32> to vector<8xf32>
    %140 = vector.shape_cast %139 : vector<8xf32> to vector<8x1xf32>
    %141 = tpu.reciprocal %140 {approx = true} : vector<8x1xf32> -> vector<8x1xf32>
    %142 = vector.broadcast %141 : vector<8x1xf32> to vector<8x10xf32>
    %143 = arith.mulf %138, %142 : vector<8x10xf32>
    %144 = arith.truncf %143 : vector<8x10xf32> to vector<8x10xbf16>
    %145 = vector.extract_strided_slice %130 {offsets = [0, 0], sizes = [10, 8], strides = [1, 1]} : vector<10x32xbf16> to vector<10x8xbf16>
    %cst_51 = arith.constant dense<0.000000e+00> : vector<8x8xf32>
    %146 = tpu.matmul %144, %145, %cst_51 {dimension_numbers = #tpu.dot_dimension_numbers<[1], [0], [0], [1], [0, 0, 1, 1], [], []>} : vector<8x10xbf16>, vector<10x8xbf16>, vector<8x8xf32> -> vector<8x8xf32>
    %147 = vector.extract_strided_slice %128 {offsets = [0, 8], sizes = [8, 8], strides = [1, 1]} : vector<8x32xbf16> to vector<8x8xbf16>
    %148 = vector.extract_strided_slice %129 {offsets = [0, 8], sizes = [10, 8], strides = [1, 1]} : vector<10x32xbf16> to vector<10x8xbf16>
    %cst_52 = arith.constant dense<0.000000e+00> : vector<8x10xf32>
    %149 = tpu.matmul %147, %148, %cst_52 {dimension_numbers = #tpu.dot_dimension_numbers<[1], [1], [0], [0], [0, 0, 1, 0], [], []>} : vector<8x8xbf16>, vector<10x8xbf16>, vector<8x10xf32> -> vector<8x10xf32>
    %cst_53 = arith.constant dense<0xFF800000> : vector<8xf32>
    %150 = vector.multi_reduction <maximumf>, %149, %cst_53 [1] : vector<8x10xf32> to vector<8xf32>
    %151 = vector.shape_cast %150 : vector<8xf32> to vector<8x1xf32>
    %152 = vector.broadcast %151 : vector<8x1xf32> to vector<8x10xf32>
    %153 = arith.subf %149, %152 : vector<8x10xf32>
    %154 = math.exp %153 : vector<8x10xf32>
    %cst_54 = arith.constant dense<0.000000e+00> : vector<8xf32>
    %155 = vector.multi_reduction <add>, %154, %cst_54 [1] : vector<8x10xf32> to vector<8xf32>
    %156 = vector.shape_cast %155 : vector<8xf32> to vector<8x1xf32>
    %157 = tpu.reciprocal %156 {approx = true} : vector<8x1xf32> -> vector<8x1xf32>
    %158 = vector.broadcast %157 : vector<8x1xf32> to vector<8x10xf32>
    %159 = arith.mulf %154, %158 : vector<8x10xf32>
    %160 = arith.truncf %159 : vector<8x10xf32> to vector<8x10xbf16>
    %161 = vector.extract_strided_slice %130 {offsets = [0, 8], sizes = [10, 8], strides = [1, 1]} : vector<10x32xbf16> to vector<10x8xbf16>
    %cst_55 = arith.constant dense<0.000000e+00> : vector<8x8xf32>
    %162 = tpu.matmul %160, %161, %cst_55 {dimension_numbers = #tpu.dot_dimension_numbers<[1], [0], [0], [1], [0, 0, 1, 1], [], []>} : vector<8x10xbf16>, vector<10x8xbf16>, vector<8x8xf32> -> vector<8x8xf32>
    %163 = vector.extract_strided_slice %128 {offsets = [0, 16], sizes = [8, 8], strides = [1, 1]} : vector<8x32xbf16> to vector<8x8xbf16>
    %164 = vector.extract_strided_slice %129 {offsets = [0, 16], sizes = [10, 8], strides = [1, 1]} : vector<10x32xbf16> to vector<10x8xbf16>
    %cst_56 = arith.constant dense<0.000000e+00> : vector<8x10xf32>
    %165 = tpu.matmul %163, %164, %cst_56 {dimension_numbers = #tpu.dot_dimension_numbers<[1], [1], [0], [0], [0, 0, 1, 0], [], []>} : vector<8x8xbf16>, vector<10x8xbf16>, vector<8x10xf32> -> vector<8x10xf32>
    %cst_57 = arith.constant dense<0xFF800000> : vector<8xf32>
    %166 = vector.multi_reduction <maximumf>, %165, %cst_57 [1] : vector<8x10xf32> to vector<8xf32>
    %167 = vector.shape_cast %166 : vector<8xf32> to vector<8x1xf32>
    %168 = vector.broadcast %167 : vector<8x1xf32> to vector<8x10xf32>
    %169 = arith.subf %165, %168 : vector<8x10xf32>
    %170 = math.exp %169 : vector<8x10xf32>
    %cst_58 = arith.constant dense<0.000000e+00> : vector<8xf32>
    %171 = vector.multi_reduction <add>, %170, %cst_58 [1] : vector<8x10xf32> to vector<8xf32>
    %172 = vector.shape_cast %171 : vector<8xf32> to vector<8x1xf32>
    %173 = tpu.reciprocal %172 {approx = true} : vector<8x1xf32> -> vector<8x1xf32>
    %174 = vector.broadcast %173 : vector<8x1xf32> to vector<8x10xf32>
    %175 = arith.mulf %170, %174 : vector<8x10xf32>
    %176 = arith.truncf %175 : vector<8x10xf32> to vector<8x10xbf16>
    %177 = vector.extract_strided_slice %130 {offsets = [0, 16], sizes = [10, 8], strides = [1, 1]} : vector<10x32xbf16> to vector<10x8xbf16>
    %cst_59 = arith.constant dense<0.000000e+00> : vector<8x8xf32>
    %178 = tpu.matmul %176, %177, %cst_59 {dimension_numbers = #tpu.dot_dimension_numbers<[1], [0], [0], [1], [0, 0, 1, 1], [], []>} : vector<8x10xbf16>, vector<10x8xbf16>, vector<8x8xf32> -> vector<8x8xf32>
    %179 = vector.extract_strided_slice %128 {offsets = [0, 24], sizes = [8, 8], strides = [1, 1]} : vector<8x32xbf16> to vector<8x8xbf16>
    %180 = vector.extract_strided_slice %129 {offsets = [0, 24], sizes = [10, 8], strides = [1, 1]} : vector<10x32xbf16> to vector<10x8xbf16>
    %cst_60 = arith.constant dense<0.000000e+00> : vector<8x10xf32>
    %181 = tpu.matmul %179, %180, %cst_60 {dimension_numbers = #tpu.dot_dimension_numbers<[1], [1], [0], [0], [0, 0, 1, 0], [], []>} : vector<8x8xbf16>, vector<10x8xbf16>, vector<8x10xf32> -> vector<8x10xf32>
    %cst_61 = arith.constant dense<0xFF800000> : vector<8xf32>
    %182 = vector.multi_reduction <maximumf>, %181, %cst_61 [1] : vector<8x10xf32> to vector<8xf32>
    %183 = vector.shape_cast %182 : vector<8xf32> to vector<8x1xf32>
    %184 = vector.broadcast %183 : vector<8x1xf32> to vector<8x10xf32>
    %185 = arith.subf %181, %184 : vector<8x10xf32>
    %186 = math.exp %185 : vector<8x10xf32>
    %cst_62 = arith.constant dense<0.000000e+00> : vector<8xf32>
    %187 = vector.multi_reduction <add>, %186, %cst_62 [1] : vector<8x10xf32> to vector<8xf32>
    %188 = vector.shape_cast %187 : vector<8xf32> to vector<8x1xf32>
    %189 = tpu.reciprocal %188 {approx = true} : vector<8x1xf32> -> vector<8x1xf32>
    %190 = vector.broadcast %189 : vector<8x1xf32> to vector<8x10xf32>
    %191 = arith.mulf %186, %190 : vector<8x10xf32>
    %192 = arith.truncf %191 : vector<8x10xf32> to vector<8x10xbf16>
    %193 = vector.extract_strided_slice %130 {offsets = [0, 24], sizes = [10, 8], strides = [1, 1]} : vector<10x32xbf16> to vector<10x8xbf16>
    %cst_63 = arith.constant dense<0.000000e+00> : vector<8x8xf32>
    %194 = tpu.matmul %192, %193, %cst_63 {dimension_numbers = #tpu.dot_dimension_numbers<[1], [0], [0], [1], [0, 0, 1, 1], [], []>} : vector<8x10xbf16>, vector<10x8xbf16>, vector<8x8xf32> -> vector<8x8xf32>
    %195 = tpu.concatenate %146, %162, %178, %194 in 1 : vector<8x8xf32>, vector<8x8xf32>, vector<8x8xf32>, vector<8x8xf32> -> vector<8x32xf32>
    %196 = arith.truncf %195 : vector<8x32xf32> to vector<8x32xbf16>
    %cst_64 = arith.constant dense<0.000000e+00> : vector<8x32xf32>
    %197 = tpu.matmul %196, %126, %cst_64 {dimension_numbers = #tpu.dot_dimension_numbers<[1], [0], [0], [1], [0, 0, 1, 1], [], []>} : vector<8x32xbf16>, vector<32x32xbf16>, vector<8x32xf32> -> vector<8x32xf32>
    %198 = vector.broadcast %127 : vector<1x32xf32> to vector<8x32xf32>
    %199 = arith.addf %197, %198 : vector<8x32xf32>
    %200 = arith.addf %111, %199 : vector<8x32xf32>
    %c2 = arith.constant 2 : index
    %c0_65 = arith.constant 0 : index
    %201 = vector.load %arg6[%c2, %c0_65] : memref<6x32xf32, #tpu.memory_space<vmem>>, vector<1x32xf32>
    %c3 = arith.constant 3 : index
    %c0_66 = arith.constant 0 : index
    %202 = vector.load %arg6[%c3, %c0_66] : memref<6x32xf32, #tpu.memory_space<vmem>>, vector<1x32xf32>
    %cst_67 = arith.constant dense<0.000000e+00> : vector<8xf32>
    %203 = vector.multi_reduction <add>, %200, %cst_67 [1] : vector<8x32xf32> to vector<8xf32>
    %204 = vector.shape_cast %203 : vector<8xf32> to vector<8x1xf32>
    %cst_68 = arith.constant 3.200000e+01 : f32
    %205 = vector.broadcast %cst_68 : f32 to vector<8x1xf32>
    %206 = arith.divf %204, %205 : vector<8x1xf32>
    %207 = vector.broadcast %206 : vector<8x1xf32> to vector<8x32xf32>
    %208 = arith.subf %200, %207 : vector<8x32xf32>
    %209 = arith.mulf %208, %208 : vector<8x32xf32>
    %cst_69 = arith.constant dense<0.000000e+00> : vector<8xf32>
    %210 = vector.multi_reduction <add>, %209, %cst_69 [1] : vector<8x32xf32> to vector<8xf32>
    %211 = vector.shape_cast %210 : vector<8xf32> to vector<8x1xf32>
    %cst_70 = arith.constant 3.200000e+01 : f32
    %212 = vector.broadcast %cst_70 : f32 to vector<8x1xf32>
    %213 = arith.divf %211, %212 : vector<8x1xf32>
    %214 = vector.broadcast %206 : vector<8x1xf32> to vector<8x32xf32>
    %215 = arith.subf %200, %214 : vector<8x32xf32>
    %cst_71 = arith.constant 9.99999974E-6 : f32
    %216 = vector.broadcast %cst_71 : f32 to vector<8x1xf32>
    %217 = arith.addf %213, %216 : vector<8x1xf32>
    %218 = math.rsqrt %217 : vector<8x1xf32>
    %219 = vector.broadcast %218 : vector<8x1xf32> to vector<8x32xf32>
    %220 = arith.mulf %215, %219 : vector<8x32xf32>
    %221 = vector.broadcast %201 : vector<1x32xf32> to vector<8x32xf32>
    %222 = arith.mulf %220, %221 : vector<8x32xf32>
    %223 = vector.broadcast %202 : vector<1x32xf32> to vector<8x32xf32>
    %224 = arith.addf %222, %223 : vector<8x32xf32>
    %225 = arith.truncf %224 : vector<8x32xf32> to vector<8x32xbf16>
    %c0_72 = arith.constant 0 : index
    %c640 = arith.constant 640 : index
    %226 = vector.load %arg3[%c0_72, %c640] : memref<32x768xbf16, #tpu.memory_space<vmem>>, vector<32x64xbf16>
    %cst_73 = arith.constant dense<0.000000e+00> : vector<8x64xf32>
    %227 = tpu.matmul %225, %226, %cst_73 {dimension_numbers = #tpu.dot_dimension_numbers<[1], [0], [0], [1], [0, 0, 1, 1], [], []>} : vector<8x32xbf16>, vector<32x64xbf16>, vector<8x64xf32> -> vector<8x64xf32>
    %c0_74 = arith.constant 0 : index
    %c640_75 = arith.constant 640 : index
    %228 = vector.load %arg5[%c0_74, %c640_75] : memref<1x896xf32, #tpu.memory_space<vmem>>, vector<1x64xf32>
    %229 = vector.broadcast %228 : vector<1x64xf32> to vector<8x64xf32>
    %230 = arith.addf %227, %229 : vector<8x64xf32>
    %cst_76 = arith.constant 0.000000e+00 : f32
    %231 = vector.broadcast %cst_76 : f32 to vector<8x64xf32>
    %232 = arith.maximumf %230, %231 : vector<8x64xf32>
    %233 = arith.truncf %232 : vector<8x64xf32> to vector<8x64xbf16>
    %c0_77 = arith.constant 0 : index
    %c0_78 = arith.constant 0 : index
    %234 = vector.load %arg4[%c0_77, %c0_78] : memref<64x32xbf16, #tpu.memory_space<vmem>>, vector<64x32xbf16>
    %cst_79 = arith.constant dense<0.000000e+00> : vector<8x32xf32>
    %235 = tpu.matmul %233, %234, %cst_79 {dimension_numbers = #tpu.dot_dimension_numbers<[1], [0], [0], [1], [0, 0, 1, 1], [], []>} : vector<8x64xbf16>, vector<64x32xbf16>, vector<8x32xf32> -> vector<8x32xf32>
    %c0_80 = arith.constant 0 : index
    %c768 = arith.constant 768 : index
    %236 = vector.load %arg5[%c0_80, %c768] : memref<1x896xf32, #tpu.memory_space<vmem>>, vector<1x32xf32>
    %237 = vector.broadcast %236 : vector<1x32xf32> to vector<8x32xf32>
    %238 = arith.addf %235, %237 : vector<8x32xf32>
    %239 = arith.addf %224, %238 : vector<8x32xf32>
    %c4 = arith.constant 4 : index
    %c0_81 = arith.constant 0 : index
    %240 = vector.load %arg6[%c4, %c0_81] : memref<6x32xf32, #tpu.memory_space<vmem>>, vector<1x32xf32>
    %c5 = arith.constant 5 : index
    %c0_82 = arith.constant 0 : index
    %241 = vector.load %arg6[%c5, %c0_82] : memref<6x32xf32, #tpu.memory_space<vmem>>, vector<1x32xf32>
    %cst_83 = arith.constant dense<0.000000e+00> : vector<8xf32>
    %242 = vector.multi_reduction <add>, %239, %cst_83 [1] : vector<8x32xf32> to vector<8xf32>
    %243 = vector.shape_cast %242 : vector<8xf32> to vector<8x1xf32>
    %cst_84 = arith.constant 3.200000e+01 : f32
    %244 = vector.broadcast %cst_84 : f32 to vector<8x1xf32>
    %245 = arith.divf %243, %244 : vector<8x1xf32>
    %246 = vector.broadcast %245 : vector<8x1xf32> to vector<8x32xf32>
    %247 = arith.subf %239, %246 : vector<8x32xf32>
    %248 = arith.mulf %247, %247 : vector<8x32xf32>
    %cst_85 = arith.constant dense<0.000000e+00> : vector<8xf32>
    %249 = vector.multi_reduction <add>, %248, %cst_85 [1] : vector<8x32xf32> to vector<8xf32>
    %250 = vector.shape_cast %249 : vector<8xf32> to vector<8x1xf32>
    %cst_86 = arith.constant 3.200000e+01 : f32
    %251 = vector.broadcast %cst_86 : f32 to vector<8x1xf32>
    %252 = arith.divf %250, %251 : vector<8x1xf32>
    %253 = vector.broadcast %245 : vector<8x1xf32> to vector<8x32xf32>
    %254 = arith.subf %239, %253 : vector<8x32xf32>
    %cst_87 = arith.constant 9.99999974E-6 : f32
    %255 = vector.broadcast %cst_87 : f32 to vector<8x1xf32>
    %256 = arith.addf %252, %255 : vector<8x1xf32>
    %257 = math.rsqrt %256 : vector<8x1xf32>
    %258 = vector.broadcast %257 : vector<8x1xf32> to vector<8x32xf32>
    %259 = arith.mulf %254, %258 : vector<8x32xf32>
    %260 = vector.broadcast %240 : vector<1x32xf32> to vector<8x32xf32>
    %261 = arith.mulf %259, %260 : vector<8x32xf32>
    %262 = vector.broadcast %241 : vector<1x32xf32> to vector<8x32xf32>
    %263 = arith.addf %261, %262 : vector<8x32xf32>
    %c0_88 = arith.constant 0 : index
    %c0_89 = arith.constant 0 : index
    %c0_90 = arith.constant 0 : index
    %264 = vector.load %arg7[%c0_88, %c0_89, %c0_90] : memref<1x8x32xf32, #tpu.memory_space<vmem>>, vector<1x8x32xf32>
    %265 = vector.shape_cast %264 : vector<1x8x32xf32> to vector<8x32xf32>
    %266 = vector.shape_cast %263 : vector<8x32xf32> to vector<1x8x32xf32>
    tpu.vector_store %arg7[%c0_88, %c0_89, %c0_90], %266 {strides = array<i32>} : memref<1x8x32xf32, #tpu.memory_space<vmem>>, vector<1x8x32xf32>,
    return
  }
  func.func @transform_0(%arg0: i32) -> (i32, i32, i32) {
    %c0_i32 = arith.constant 0 : i32
    %c0_i32_0 = arith.constant 0 : i32
    %c0_i32_1 = arith.constant 0 : i32
    return %arg0, %c0_i32, %c0_i32_0 : i32, i32, i32
  }
  func.func @transform_1(%arg0: i32) -> (i32, i32, i32) {
    %c0_i32 = arith.constant 0 : i32
    %c0_i32_0 = arith.constant 0 : i32
    %c0_i32_1 = arith.constant 0 : i32
    return %arg0, %c0_i32, %c0_i32_0 : i32, i32, i32
  }
  func.func @transform_2(%arg0: i32) -> (i32, i32) {
    %c0_i32 = arith.constant 0 : i32
    %c0_i32_0 = arith.constant 0 : i32
    %c0_i32_1 = arith.constant 0 : i32
    return %c0_i32, %c0_i32_0 : i32, i32
  }
  func.func @transform_3(%arg0: i32) -> (i32, i32) {
    %c0_i32 = arith.constant 0 : i32
    %c0_i32_0 = arith.constant 0 : i32
    %c0_i32_1 = arith.constant 0 : i32
    return %c0_i32, %c0_i32_0 : i32, i32
  }
  func.func @transform_4(%arg0: i32) -> (i32, i32) {
    %c0_i32 = arith.constant 0 : i32
    %c0_i32_0 = arith.constant 0 : i32
    %c0_i32_1 = arith.constant 0 : i32
    return %c0_i32, %c0_i32_0 : i32, i32
  }
  func.func @transform_5(%arg0: i32) -> (i32, i32) {
    %c0_i32 = arith.constant 0 : i32
    %c0_i32_0 = arith.constant 0 : i32
    %c0_i32_1 = arith.constant 0 : i32
    return %c0_i32, %c0_i32_0 : i32, i32
  }
  func.func @transform_6(%arg0: i32) -> (i32, i32, i32) {
    %c0_i32 = arith.constant 0 : i32
    %c0_i32_0 = arith.constant 0 : i32
    %c0_i32_1 = arith.constant 0 : i32
    return %arg0, %c0_i32, %c0_i32_0 : i32, i32, i32
  }
}

</mosaic_0001>

<llo_original>
// kernel: transformer_decoder_layer.1
$region0: #{transformer_decoder_layer.1}
  #allocation0 [shape = 'u32[]', space=smem, size = 0x4, offset = 0x4, fixed_abs, tag = 'smem constant byte address 0x4 - core index']
  #allocation1 [shape = 'u32[72,128]{1,0:T(1,128)}', space=vmem, size = 0x9000, scoped, tag = 'internal scratch']
  %s0 = inlined_call_operand.vmem [shape: f32[2,8,32], index: 0, kind: input, shape index: {}]
  %s1 = inlined_call_operand.vmem [shape: f32[2,10,32], index: 1, kind: input, shape index: {}]
  %s2 = inlined_call_operand.vmem [shape: bf16[32,768], index: 2, kind: input, shape index: {}]
  %s3 = inlined_call_operand.vmem [shape: bf16[64,32], index: 3, kind: input, shape index: {}]
  %s4 = inlined_call_operand.vmem [shape: f32[1,896], index: 4, kind: input, shape index: {}]
  %s5 = inlined_call_operand.vmem [shape: f32[6,32], index: 5, kind: input, shape index: {}]
  %s6 = inlined_call_operand.vmem [shape: f32[2,8,32], index: 6, kind: output, shape index: {}]
  %s7 = sld [smem:[#allocation0]]
  $region57: #{transformer_decoder_layer.1} parent=0
    _
  %s9 = ssub.s32 1, %s7
  %s10 = scalar_select 0, %s9, %s7
  loop: start=0, step=1, limit=4
  $region2: #{transformer_decoder_layer.1} parent=0 // loop_pre_header
    _
  $region3: #{transformer_decoder_layer.1} parent=0 // loop_header
    %s12 = sphi 0, %s16
    %p13 = scmp.ge.s32.totalorder %s12, 4
    %s22 = sphi 0, %s24
    %s25 = sphi 0, %s22
    %s26 = sphi 0, %s25
    %s42 = sphi 0, %s26
    %s48 = sphi 0, %s50
    %s51 = sphi 0, %s48
    %s52 = sphi 0, %s51
    %s68 = sphi 0, %s52
    %s72 = sphi 0, %s72
    %s74 = sphi 0, %s72
    %s75 = sphi 0, %s74
    %s89 = sphi 0, %s75
    %s93 = sphi 0, %s93
    %s95 = sphi 0, %s93
    %s96 = sphi 0, %s95
    %s110 = sphi 0, %s96
    %s114 = sphi 0, %s114
    %s116 = sphi 0, %s114
    %s117 = sphi 0, %s116
    %s131 = sphi 0, %s117
    %s135 = sphi 0, %s135
    %s137 = sphi 0, %s135
    %s138 = sphi 0, %s137
    %s152 = sphi 0, %s138
    %s158 = sphi 0, %s160
    %s161 = sphi 0, %s158
    %s162 = sphi 0, %s161
    %s178 = sphi 0, %s162
  $region4: #{transformer_decoder_layer.1} parent=0 // loop_header_branch
    %15 = sbr.rel (%p13) target = $region8
  $region5: #{transformer_decoder_layer.1} parent=0 // loop_body
    %s17 = ssub.s32 %s12, 1
    %s18 = ssub.s32 %s12, 2
    %s19 = sadd.s32 %s12, 1
    %s20 = ssub.s32 %s12, %s19
    %p21 = scmp.eq.s32.totalorder %s20, 0
    %s23 = sadd.s32 %s22, 1
    %s24 = scalar_select %p21, %s22, %s23
    %p27 = pneg %p21
    %p28 = scmp.eq.s32.totalorder %s12, 1
    %p29 = por %p27, %p28
    %p30 = scmp.ne.s32.totalorder %s22, %s25
    %p31 = scmp.eq.s32.totalorder %s12, 0
    %p32 = por %p30, %p31
    %p33 = scmp.ne.s32.totalorder %s22, %s25
    %p34 = scmp.eq.s32.totalorder %s17, 1
    %p35 = por %p33, %p34
    %p36 = scmp.ne.s32.totalorder %s25, %s26
    %p37 = scmp.eq.s32.totalorder %s17, 0
    %p38 = por %p36, %p37
    %p39 = scmp.ne.s32.totalorder %s25, %s26
    %p40 = scmp.eq.s32.totalorder %s18, 1
    %p41 = por %p39, %p40
    %p43 = scmp.ne.s32.totalorder %s26, %s42
    %p44 = scmp.eq.s32.totalorder %s18, 0
    %p45 = por %p43, %p44
    %s46 = ssub.s32 %s12, %s19
    %p47 = scmp.eq.s32.totalorder %s46, 0
    %s49 = sadd.s32 %s48, 1
    %s50 = scalar_select %p47, %s48, %s49
    %p53 = pneg %p47
    %p54 = scmp.eq.s32.totalorder %s12, 1
    %p55 = por %p53, %p54
    %p56 = scmp.ne.s32.totalorder %s48, %s51
    %p57 = scmp.eq.s32.totalorder %s12, 0
    %p58 = por %p56, %p57
    %p59 = scmp.ne.s32.totalorder %s48, %s51
    %p60 = scmp.eq.s32.totalorder %s17, 1
    %p61 = por %p59, %p60
    %p62 = scmp.ne.s32.totalorder %s51, %s52
    %p63 = scmp.eq.s32.totalorder %s17, 0
    %p64 = por %p62, %p63
    %p65 = scmp.ne.s32.totalorder %s51, %s52
    %p66 = scmp.eq.s32.totalorder %s18, 1
    %p67 = por %p65, %p66
    %p69 = scmp.ne.s32.totalorder %s52, %s68
    %p70 = scmp.eq.s32.totalorder %s18, 0
    %p71 = por %p69, %p70
    %s73 = sadd.s32 %s72, 1
    %p76 = scmp.eq.s32.totalorder %s12, 1
    %p77 = scmp.ne.s32.totalorder %s72, %s74
    %p78 = scmp.eq.s32.totalorder %s12, 0
    %p79 = por %p77, %p78
    %p80 = scmp.ne.s32.totalorder %s72, %s74
    %p81 = scmp.eq.s32.totalorder %s17, 1
    %p82 = por %p80, %p81
    %p83 = scmp.ne.s32.totalorder %s74, %s75
    %p84 = scmp.eq.s32.totalorder %s17, 0
    %p85 = por %p83, %p84
    %p86 = scmp.ne.s32.totalorder %s74, %s75
    %p87 = scmp.eq.s32.totalorder %s18, 1
    %p88 = por %p86, %p87
    %p90 = scmp.ne.s32.totalorder %s75, %s89
    %p91 = scmp.eq.s32.totalorder %s18, 0
    %p92 = por %p90, %p91
    %s94 = sadd.s32 %s93, 1
    %p97 = scmp.eq.s32.totalorder %s12, 1
    %p98 = scmp.ne.s32.totalorder %s93, %s95
    %p99 = scmp.eq.s32.totalorder %s12, 0
    %p100 = por %p98, %p99
    %p101 = scmp.ne.s32.totalorder %s93, %s95
    %p102 = scmp.eq.s32.totalorder %s17, 1
    %p103 = por %p101, %p102
    %p104 = scmp.ne.s32.totalorder %s95, %s96
    %p105 = scmp.eq.s32.totalorder %s17, 0
    %p106 = por %p104, %p105
    %p107 = scmp.ne.s32.totalorder %s95, %s96
    %p108 = scmp.eq.s32.totalorder %s18, 1
    %p109 = por %p107, %p108
    %p111 = scmp.ne.s32.totalorder %s96, %s110
    %p112 = scmp.eq.s32.totalorder %s18, 0
    %p113 = por %p111, %p112
    %s115 = sadd.s32 %s114, 1
    %p118 = scmp.eq.s32.totalorder %s12, 1
    %p119 = scmp.ne.s32.totalorder %s114, %s116
    %p120 = scmp.eq.s32.totalorder %s12, 0
    %p121 = por %p119, %p120
    %p122 = scmp.ne.s32.totalorder %s114, %s116
    %p123 = scmp.eq.s32.totalorder %s17, 1
    %p124 = por %p122, %p123
    %p125 = scmp.ne.s32.totalorder %s116, %s117
    %p126 = scmp.eq.s32.totalorder %s17, 0
    %p127 = por %p125, %p126
    %p128 = scmp.ne.s32.totalorder %s116, %s117
    %p129 = scmp.eq.s32.totalorder %s18, 1
    %p130 = por %p128, %p129
    %p132 = scmp.ne.s32.totalorder %s117, %s131
    %p133 = scmp.eq.s32.totalorder %s18, 0
    %p134 = por %p132, %p133
    %s136 = sadd.s32 %s135, 1
    %p139 = scmp.eq.s32.totalorder %s12, 1
    %p140 = scmp.ne.s32.totalorder %s135, %s137
    %p141 = scmp.eq.s32.totalorder %s12, 0
    %p142 = por %p140, %p141
    %p143 = scmp.ne.s32.totalorder %s135, %s137
    %p144 = scmp.eq.s32.totalorder %s17, 1
    %p145 = por %p143, %p144
    %p146 = scmp.ne.s32.totalorder %s137, %s138
    %p147 = scmp.eq.s32.totalorder %s17, 0
    %p148 = por %p146, %p147
    %p149 = scmp.ne.s32.totalorder %s137, %s138
    %p150 = scmp.eq.s32.totalorder %s18, 1
    %p151 = por %p149, %p150
    %p153 = scmp.ne.s32.totalorder %s138, %s152
    %p154 = scmp.eq.s32.totalorder %s18, 0
    %p155 = por %p153, %p154
    %s156 = ssub.s32 %s12, %s19
    %p157 = scmp.eq.s32.totalorder %s156, 0
    %s159 = sadd.s32 %s158, 1
    %s160 = scalar_select %p157, %s158, %s159
    %p163 = pneg %p157
    %p164 = scmp.eq.s32.totalorder %s12, 1
    %p165 = por %p163, %p164
    %p166 = scmp.ne.s32.totalorder %s158, %s161
    %p167 = scmp.eq.s32.totalorder %s12, 0
    %p168 = por %p166, %p167
    %p169 = scmp.ne.s32.totalorder %s158, %s161
    %p170 = scmp.eq.s32.totalorder %s17, 1
    %p171 = por %p169, %p170
    %p172 = scmp.ne.s32.totalorder %s161, %s162
    %p173 = scmp.eq.s32.totalorder %s17, 0
    %p174 = por %p172, %p173
    %p175 = scmp.ne.s32.totalorder %s161, %s162
    %p176 = scmp.eq.s32.totalorder %s18, 1
    %p177 = por %p175, %p176
    %p179 = scmp.ne.s32.totalorder %s162, %s178
    %p180 = scmp.eq.s32.totalorder %s18, 0
    %p181 = por %p179, %p180
    %p182 = scmp.le.s32.totalorder 1, %s12
    %p183 = scmp.lt.s32.totalorder %s12, 3
    %p184 = pnand %p182, %p183
    %p185 = pneg %p184
    // Predicated region
    $region9: #{transformer_decoder_layer.1} parent=5 // pred_check
      _
    $region10: #{transformer_decoder_layer.1} parent=5 // pred_check_branch
      %187 = sbr.rel (%p184) target = $region12
    $region11: #{transformer_decoder_layer.1} parent=5 // pred_region
      %s188 = ssub.s32 %s12, 1
      // Predicated region
      $region13: #{transformer_decoder_layer.1} parent=11 // pred_check
        %p189 = pneg %p85
      $region14: #{transformer_decoder_layer.1} parent=11 // pred_check_branch
        %191 = sbr.rel (%p189) target = $region16
      $region15: #{transformer_decoder_layer.1} parent=11 // pred_region
        _
      $region16: #{transformer_decoder_layer.1} parent=11 // pred_fallthru
        _
      // Predicated region
      $region17: #{transformer_decoder_layer.1} parent=11 // pred_check
        %p192 = pneg %p106
      $region18: #{transformer_decoder_layer.1} parent=11 // pred_check_branch
        %194 = sbr.rel (%p192) target = $region20
      $region19: #{transformer_decoder_layer.1} parent=11 // pred_region
        _
      $region20: #{transformer_decoder_layer.1} parent=11 // pred_fallthru
        _
      // Predicated region
      $region21: #{transformer_decoder_layer.1} parent=11 // pred_check
        %p195 = pneg %p127
      $region22: #{transformer_decoder_layer.1} parent=11 // pred_check_branch
        %197 = sbr.rel (%p195) target = $region24
      $region23: #{transformer_decoder_layer.1} parent=11 // pred_region
        _
      $region24: #{transformer_decoder_layer.1} parent=11 // pred_fallthru
        _
      // Predicated region
      $region25: #{transformer_decoder_layer.1} parent=11 // pred_check
        %p198 = pneg %p148
      $region26: #{transformer_decoder_layer.1} parent=11 // pred_check_branch
        %200 = sbr.rel (%p198) target = $region28
      $region27: #{transformer_decoder_layer.1} parent=11 // pred_region
        _
      $region28: #{transformer_decoder_layer.1} parent=11 // pred_fallthru
        _
    $region12: #{transformer_decoder_layer.1} parent=5 // pred_fallthru
      _
    %p201 = scmp.lt.s32.totalorder %s12, 2
    // Predicated region
    $region29: #{transformer_decoder_layer.1} parent=5 // pred_check
      %p202 = pneg %p201
    $region30: #{transformer_decoder_layer.1} parent=5 // pred_check_branch
      %204 = sbr.rel (%p202) target = $region32
    $region31: #{transformer_decoder_layer.1} parent=5 // pred_region
      // Predicated region
      $region33: #{transformer_decoder_layer.1} parent=31 // pred_check
        %p205 = pneg %p32
      $region34: #{transformer_decoder_layer.1} parent=31 // pred_check_branch
        %207 = sbr.rel (%p205) target = $region36
      $region35: #{transformer_decoder_layer.1} parent=31 // pred_region
        %p208 = scmp.lt.s32.totalorder %s12, 1
        %s209 = scalar_select %p208, %s12, 1
        %s210 = smul.addr %s209, 8
        %s211 = scalar_lea.vmem %s0, %s210
      $region36: #{transformer_decoder_layer.1} parent=31 // pred_fallthru
        _
      // Predicated region
      $region37: #{transformer_decoder_layer.1} parent=31 // pred_check
        %p212 = pneg %p58
      $region38: #{transformer_decoder_layer.1} parent=31 // pred_check_branch
        %214 = sbr.rel (%p212) target = $region40
      $region39: #{transformer_decoder_layer.1} parent=31 // pred_region
        %p215 = scmp.lt.s32.totalorder %s12, 1
        %s216 = scalar_select %p215, %s12, 1
        %s217 = smul.addr %s216, 2
        %s218 = smul.addr %s217, 8
        %s219 = scalar_lea.vmem %s1, %s218
      $region40: #{transformer_decoder_layer.1} parent=31 // pred_fallthru
        _
    $region32: #{transformer_decoder_layer.1} parent=5 // pred_fallthru
      _
    %p220 = scmp.le.s32.totalorder 1, %s12
    %p221 = scmp.lt.s32.totalorder %s12, 3
    %p222 = pnand %p220, %p221
    %p223 = pneg %p222
    // Predicated region
    $region41: #{transformer_decoder_layer.1} parent=5 // pred_check
      _
    $region42: #{transformer_decoder_layer.1} parent=5 // pred_check_branch
      %225 = sbr.rel (%p222) target = $region44
    $region43: #{transformer_decoder_layer.1} parent=5 // pred_region
      %s226 = ssub.s32 %s12, 1
      %p227 = scmp.lt.s32.totalorder %s17, 1
      %s228 = scalar_select %p227, %s17, 1
      %s229 = smul.addr %s228, 8
      %s230 = scalar_lea.vmem %s0, %s229
      %p231 = pneg %p38
      %p232 = pneg %p35
      %p233 = scmp.lt.s32.totalorder %s17, 1
      %s234 = scalar_select %p233, %s17, 1
      %s235 = smul.addr %s234, 2
      %s236 = smul.addr %s235, 8
      %s237 = scalar_lea.vmem %s1, %s236
      %p238 = pneg %p64
      %p239 = pneg %p61
      %p240 = pneg %p85
      %p241 = pneg %p82
      %p242 = pneg %p106
      %p243 = pneg %p103
      %p244 = pneg %p127
      %p245 = pneg %p124
      %p246 = pneg %p148
      %p247 = pneg %p145
      %p248 = pneg %p174
      %p249 = pneg %p171
      %p250 = scmp.lt.s32.totalorder %s17, 1
      %s251 = scalar_select %p250, %s17, 1
      %s252 = smul.addr %s251, 8
      %s253 = scalar_lea.vmem %s6, %s252
      %p254 = scmp.lt.s32.totalorder %s17, 1
      %s255 = scalar_select %p254, %s17, 1
      %s256 = smul.addr %s255, 8
      %s257 = scalar_lea.vmem %s0, %s256
      %p258 = scmp.lt.s32.totalorder %s17, 1
      %s259 = scalar_select %p258, %s17, 1
      %s260 = smul.addr %s259, 2
      %s261 = smul.addr %s260, 8
      %s262 = scalar_lea.vmem %s1, %s261
      %p263 = scmp.lt.s32.totalorder %s17, 1
      %s264 = scalar_select %p263, %s17, 1
      %s265 = smul.addr %s264, 8
      %s266 = scalar_lea.vmem %s6, %s265
      %v268 = vld [vmem:[%s257] sm:$0xff]
      %v269 = vld [vmem:[%s262] sm:$0xff]
      %v270 = vld [vmem:[%s262 + $0x8] sm:$0x3]
      %v271 = vpack.c.bf16 %v268, %v268
      %v272 = vld [vmem:[%s2] sm:$0xf]
      %v273 = vld [vmem:[%s2 + $0x18] sm:$0xf]
      %v274 = vld [vmem:[%s2 + $0x30] sm:$0xf]
      %v275 = vld [vmem:[%s2 + $0x48] sm:$0xf]
      %v276 = vld [vmem:[%s4] sm:$0x1]
      %v278 = vperm.slane %v276, 0
      %v284 = vunpack.c.l.b16 %v272
      %v285 = vunpack.c.l.b16 %v273
      %v286 = vunpack.c.l.b16 %v274
      %v287 = vunpack.c.l.b16 %v275
      %v288 = vpack.c.b16 %v285, %v284
      %v289 = vpack.c.b16 %v287, %v286
      %vm292 = vcmask 261120
      %v294 = vsel %vm292, %v271, 0
      %296 = vmatpush.bf16.msra.mxu0 0
      %297 = vmatpush.bf16.msra.mxu0 0
      %298 = vmatpush.bf16.msra.mxu0 0
      %299 = vmatpush.bf16.msra.mxu0 0
      %300 = vmatpush.bf16.msra.mxu0 0
      %301 = vmatpush.bf16.msra.mxu0 0
      %302 = vmatpush.bf16.msra.mxu0 %v289
      %303 = vmatpush.bf16.msra.mxu0 %v288
      %304 = vmatmul.bf16.gmra.mxu0 %v294
      %v305 = vpop.f32.mrf.mxu0
      %v306 = vadd.f32 %v278, %v305
      %v307 = vpop.f32.mrf.mxu0
      %308 = vdwg.mxu0
      %v309 = vld [vmem:[%s2 + $0x4] sm:$0xf]
      %v310 = vld [vmem:[%s2 + $0x1c] sm:$0xf]
      %v311 = vld [vmem:[%s2 + $0x34] sm:$0xf]
      %v312 = vld [vmem:[%s2 + $0x4c] sm:$0xf]
      %v313 = vld [vmem:[%s4 + $0x1] sm:$0x1]
      %v314 = vpack.c.bf16 %v306, %v306
      %v316 = vunpack.c.l.b16 %v314
      %v317 = vpack.c.b16 %v316, %v316
      %318 = vrot.lane.b32.xlu0 %v317, 96
      %v319 = vpop.permute.xlu0 %318
      %vm320 = vcmask 64512
      %v322 = vsel %vm320, %v314, 0
      %v325 = vsel %vm320, %v319, 0
      %327 = vmatpush.bf16.xpose.msra.mxu0 0
      %328 = vmatpush.bf16.xpose.msra.mxu0 0
      %329 = vmatpush.bf16.xpose.msra.mxu0 0
      %330 = vmatpush.bf16.xpose.msra.mxu0 0
      %331 = vmatpush.bf16.xpose.msra.mxu0 0
      %332 = vmatpush.bf16.xpose.msra.mxu0 0
      %333 = vmatpush.bf16.xpose.msra.mxu0 0
      %334 = vmatpush.bf16.xpose.msra.mxu0 %v325
      %335 = vmatmul.bf16.gmra.mxu0 %v322
      %v336 = vpop.f32.mrf.mxu0
      %v337 = vadd.f32 0.0, %v336
      %v338 = vpop.f32.mrf.mxu0
      %339 = vdwg.mxu0
      %v340 = vsel %vm320, %v337, -inf
      %341 = vmax.xlane.f32.xlu0 %v340
      %v342 = vpop.xlane.xlu0 %341
      %v343 = vsub.f32 %v337, %v342
      %v344 = vmul.f32 %v343, 1.442695
      %v345 = vpow.pop %v344
      %v346 = vsel %vm320, %v345, 0.0
      %347 = vadd.xlane.f32.xlu0 %v346
      %v348 = vpop.xlane.xlu0 %347
      %v349 = vrcp.pop %v348
      %v350 = vmul.f32 %v345, %v349
      %v351 = vpack.c.bf16 %v350, %v350
      %352 = vrot.lane.b32.xlu0 %v317, 64
      %v353 = vpop.permute.xlu0 %352
      %v355 = vsel %vm320, %v351, 0
      %vm357 = vcmask 1043456
      %v359 = vsel %vm357, %v353, 0
      %361 = vmatpush.bf16.msra.mxu0 0
      %362 = vmatpush.bf16.msra.mxu0 0
      %363 = vmatpush.bf16.msra.mxu0 0
      %364 = vmatpush.bf16.msra.mxu0 0
      %365 = vmatpush.bf16.msra.mxu0 0
      %366 = vmatpush.bf16.msra.mxu0 0
      %367 = vmatpush.bf16.msra.mxu0 0
      %368 = vmatpush.bf16.msra.mxu0 %v359
      %369 = vmatmul.bf16.gmra.mxu0 %v355
      %v370 = vpop.f32.mrf.mxu0
      %v371 = vadd.f32 0.0, %v370
      %v372 = vpop.f32.mrf.mxu0
      %373 = vdwg.mxu0
      %374 = vrot.lane.b32.xlu0 %v317, 120
      %v375 = vpop.permute.xlu0 %374
      %376 = vrot.lane.b32.xlu0 %v317, 88
      %v377 = vpop.permute.xlu0 %376
      %v379 = vsel %vm320, %v375, 0
      %v382 = vsel %vm320, %v377, 0
      %384 = vmatpush.bf16.xpose.msra.mxu0 0
      %385 = vmatpush.bf16.xpose.msra.mxu0 0
      %386 = vmatpush.bf16.xpose.msra.mxu0 0
      %387 = vmatpush.bf16.xpose.msra.mxu0 0
      %388 = vmatpush.bf16.xpose.msra.mxu0 0
      %389 = vmatpush.bf16.xpose.msra.mxu0 0
      %390 = vmatpush.bf16.xpose.msra.mxu0 0
      %391 = vmatpush.bf16.xpose.msra.mxu0 %v382
      %392 = vmatmul.bf16.gmra.mxu0 %v379
      %v393 = vpop.f32.mrf.mxu0
      %v394 = vadd.f32 0.0, %v393
      %v395 = vpop.f32.mrf.mxu0
      %396 = vdwg.mxu0
      %v397 = vsel %vm320, %v394, -inf
      %398 = vmax.xlane.f32.xlu0 %v397
      %v399 = vpop.xlane.xlu0 %398
      %v400 = vsub.f32 %v394, %v399
      %v401 = vmul.f32 %v400, 1.442695
      %v402 = vpow.pop %v401
      %v403 = vsel %vm320, %v402, 0.0
      %404 = vadd.xlane.f32.xlu0 %v403
      %v405 = vpop.xlane.xlu0 %404
      %v406 = vrcp.pop %v405
      %v407 = vmul.f32 %v402, %v406
      %v408 = vpack.c.bf16 %v407, %v407
      %409 = vrot.lane.b32.xlu0 %v317, 56
      %v410 = vpop.permute.xlu0 %409
      %v412 = vsel %vm320, %v408, 0
      %v415 = vsel %vm357, %v410, 0
      %417 = vmatpush.bf16.msra.mxu0 0
      %418 = vmatpush.bf16.msra.mxu0 0
      %419 = vmatpush.bf16.msra.mxu0 0
      %420 = vmatpush.bf16.msra.mxu0 0
      %421 = vmatpush.bf16.msra.mxu0 0
      %422 = vmatpush.bf16.msra.mxu0 0
      %423 = vmatpush.bf16.msra.mxu0 0
      %424 = vmatpush.bf16.msra.mxu0 %v415
      %425 = vmatmul.bf16.gmra.mxu0 %v412
      %v426 = vpop.f32.mrf.mxu0
      %v427 = vadd.f32 0.0, %v426
      %v428 = vpop.f32.mrf.mxu0
      %429 = vdwg.mxu0
      %430 = vrot.lane.b32.xlu0 %v317, 112
      %v431 = vpop.permute.xlu0 %430
      %432 = vrot.lane.b32.xlu0 %v317, 80
      %v433 = vpop.permute.xlu0 %432
      %v435 = vsel %vm320, %v431, 0
      %v438 = vsel %vm320, %v433, 0
      %440 = vmatpush.bf16.xpose.msra.mxu0 0
      %441 = vmatpush.bf16.xpose.msra.mxu0 0
      %442 = vmatpush.bf16.xpose.msra.mxu0 0
      %443 = vmatpush.bf16.xpose.msra.mxu0 0
      %444 = vmatpush.bf16.xpose.msra.mxu0 0
      %445 = vmatpush.bf16.xpose.msra.mxu0 0
      %446 = vmatpush.bf16.xpose.msra.mxu0 0
      %447 = vmatpush.bf16.xpose.msra.mxu0 %v438
      %448 = vmatmul.bf16.gmra.mxu0 %v435
      %v449 = vpop.f32.mrf.mxu0
      %v450 = vadd.f32 0.0, %v449
      %v451 = vpop.f32.mrf.mxu0
      %452 = vdwg.mxu0
      %v453 = vsel %vm320, %v450, -inf
      %454 = vmax.xlane.f32.xlu0 %v453
      %v455 = vpop.xlane.xlu0 %454
      %v456 = vsub.f32 %v450, %v455
      %v457 = vmul.f32 %v456, 1.442695
      %v458 = vpow.pop %v457
      %v459 = vsel %vm320, %v458, 0.0
      %460 = vadd.xlane.f32.xlu0 %v459
      %v461 = vpop.xlane.xlu0 %460
      %v462 = vrcp.pop %v461
      %v463 = vmul.f32 %v458, %v462
      %v464 = vpack.c.bf16 %v463, %v463
      %465 = vrot.lane.b32.xlu0 %v317, 48
      %v466 = vpop.permute.xlu0 %465
      %v468 = vsel %vm320, %v464, 0
      %v471 = vsel %vm357, %v466, 0
      %473 = vmatpush.bf16.msra.mxu0 0
      %474 = vmatpush.bf16.msra.mxu0 0
      %475 = vmatpush.bf16.msra.mxu0 0
      %476 = vmatpush.bf16.msra.mxu0 0
      %477 = vmatpush.bf16.msra.mxu0 0
      %478 = vmatpush.bf16.msra.mxu0 0
      %479 = vmatpush.bf16.msra.mxu0 0
      %480 = vmatpush.bf16.msra.mxu0 %v471
      %481 = vmatmul.bf16.gmra.mxu0 %v468
      %v482 = vpop.f32.mrf.mxu0
      %v483 = vadd.f32 0.0, %v482
      %v484 = vpop.f32.mrf.mxu0
      %485 = vdwg.mxu0
      %486 = vrot.lane.b32.xlu0 %v317, 104
      %v487 = vpop.permute.xlu0 %486
      %488 = vrot.lane.b32.xlu0 %v317, 72
      %v489 = vpop.permute.xlu0 %488
      %v491 = vsel %vm320, %v487, 0
      %v494 = vsel %vm320, %v489, 0
      %496 = vmatpush.bf16.xpose.msra.mxu0 0
      %497 = vmatpush.bf16.xpose.msra.mxu0 0
      %498 = vmatpush.bf16.xpose.msra.mxu0 0
      %499 = vmatpush.bf16.xpose.msra.mxu0 0
      %500 = vmatpush.bf16.xpose.msra.mxu0 0
      %501 = vmatpush.bf16.xpose.msra.mxu0 0
      %502 = vmatpush.bf16.xpose.msra.mxu0 0
      %503 = vmatpush.bf16.xpose.msra.mxu0 %v494
      %504 = vmatmul.bf16.gmra.mxu0 %v491
      %v505 = vpop.f32.mrf.mxu0
      %v506 = vadd.f32 0.0, %v505
      %v507 = vpop.f32.mrf.mxu0
      %508 = vdwg.mxu0
      %v509 = vsel %vm320, %v506, -inf
      %510 = vmax.xlane.f32.xlu0 %v509
      %v511 = vpop.xlane.xlu0 %510
      %v512 = vsub.f32 %v506, %v511
      %v513 = vmul.f32 %v512, 1.442695
      %v514 = vpow.pop %v513
      %v515 = vsel %vm320, %v514, 0.0
      %516 = vadd.xlane.f32.xlu0 %v515
      %v517 = vpop.xlane.xlu0 %516
      %v518 = vrcp.pop %v517
      %v519 = vmul.f32 %v514, %v518
      %v520 = vpack.c.bf16 %v519, %v519
      %521 = vrot.lane.b32.xlu0 %v317, 40
      %v522 = vpop.permute.xlu0 %521
      %v524 = vsel %vm320, %v520, 0
      %v527 = vsel %vm357, %v522, 0
      %529 = vmatpush.bf16.msra.mxu0 0
      %530 = vmatpush.bf16.msra.mxu0 0
      %531 = vmatpush.bf16.msra.mxu0 0
      %532 = vmatpush.bf16.msra.mxu0 0
      %533 = vmatpush.bf16.msra.mxu0 0
      %534 = vmatpush.bf16.msra.mxu0 0
      %535 = vmatpush.bf16.msra.mxu0 0
      %536 = vmatpush.bf16.msra.mxu0 %v527
      %537 = vmatmul.bf16.gmra.mxu0 %v524
      %v538 = vpop.f32.mrf.mxu0
      %v539 = vadd.f32 0.0, %v538
      %v540 = vpop.f32.mrf.mxu0
      %541 = vdwg.mxu0
      %543 = vrot.lane.b32.xlu0 %v427, 8
      %v544 = vpop.permute.xlu0 %543
      %547 = vrot.lane.b32.xlu0 %v483, 16
      %v548 = vpop.permute.xlu0 %547
      %551 = vrot.lane.b32.xlu0 %v539, 24
      %v552 = vpop.permute.xlu0 %551
      %v554 = vsel %vm320, %v371, %v544
      %vm555 = vcmask 130048
      %v556 = vsel %vm555, %v554, %v548
      %vm557 = vcmask 195584
      %v558 = vsel %vm557, %v556, %v552
      %v559 = vpack.c.bf16 %v558, %v558
      %v561 = vperm.slane %v313, 0
      %v567 = vunpack.c.l.b16 %v309
      %v568 = vunpack.c.l.b16 %v310
      %v569 = vunpack.c.l.b16 %v311
      %v570 = vunpack.c.l.b16 %v312
      %v571 = vpack.c.b16 %v568, %v567
      %v572 = vpack.c.b16 %v570, %v569
      %v576 = vsel %vm292, %v559, 0
      %578 = vmatpush.bf16.msra.mxu0 0
      %579 = vmatpush.bf16.msra.mxu0 0
      %580 = vmatpush.bf16.msra.mxu0 0
      %581 = vmatpush.bf16.msra.mxu0 0
      %582 = vmatpush.bf16.msra.mxu0 0
      %583 = vmatpush.bf16.msra.mxu0 0
      %584 = vmatpush.bf16.msra.mxu0 %v572
      %585 = vmatpush.bf16.msra.mxu0 %v571
      %586 = vmatmul.bf16.gmra.mxu0 %v576
      %v587 = vpop.f32.mrf.mxu0
      %v588 = vadd.f32 %v561, %v587
      %v589 = vpop.f32.mrf.mxu0
      %590 = vdwg.mxu0
      %v591 = vadd.f32 %v268, %v588
      %v592 = vld [vmem:[%s5] sm:$0x1]
      %v593 = vld [vmem:[%s5 + $0x1] sm:$0x1]
      %v594 = vsel %vm292, %v591, 0.0
      %595 = vadd.xlane.f32.xlu0 %v594
      %v596 = vpop.xlane.xlu0 %595
      %v597 = vrcp.pop 32.0
      %v598 = vmul.f32 32.0, %v597
      %v599 = vsub.f32 1.0, %v598
      %v600 = vmul.f32 %v597, %v599
      %v601 = vadd.f32 %v597, %v600
      %vm602 = vweird.f32 %v597
      %v603 = vsel %vm602, %v597, %v601
      %v604 = vmul.f32 %v596, %v603
      %v605 = vsub.f32 %v591, %v604
      %v606 = vmul.f32 %v605, %v605
      %v607 = vsel %vm292, %v606, 0.0
      %608 = vadd.xlane.f32.xlu0 %v607
      %v609 = vpop.xlane.xlu0 %608
      %v610 = vmul.f32 %v609, %v603
      %v611 = vadd.f32 %v610, 1e-05
      %v612 = vrsqrt.pop %v611
      %v613 = vmul.f32 %v612, %v611
      %v614 = vmul.f32 %v613, %v612
      %v615 = vmul.f32 0.5, %v614
      %v616 = vsub.f32 1.5, %v615
      %v617 = vmul.f32 %v612, %v616
      %vm618 = vweird.f32 %v611
      %vm619 = vweird.f32 %v612
      %vm620 = vmor %vm618, %vm619
      %v621 = vsel %vm620, %v612, %v617
      %v622 = vmul.f32 %v605, %v621
      %v623 = vperm.slane %v592, 0
      %v624 = vmul.f32 %v622, %v623
      %v625 = vperm.slane %v593, 0
      %v626 = vadd.f32 %v624, %v625
      %v627 = vpack.c.bf16 %v626, %v626
      %v628 = vld [vmem:[%s2 + $0x8] sm:$0xf]
      %v629 = vld [vmem:[%s2 + $0x20] sm:$0xf]
      %v630 = vld [vmem:[%s2 + $0x38] sm:$0xf]
      %v631 = vld [vmem:[%s2 + $0x50] sm:$0xf]
      %v632 = vld [vmem:[%s4 + $0x2] sm:$0x1]
      %v634 = vperm.slane %v632, 0
      %v640 = vunpack.c.l.b16 %v628
      %v641 = vunpack.c.l.b16 %v629
      %v642 = vunpack.c.l.b16 %v630
      %v643 = vunpack.c.l.b16 %v631
      %v644 = vpack.c.b16 %v641, %v640
      %v645 = vpack.c.b16 %v643, %v642
      %v649 = vsel %vm292, %v627, 0
      %651 = vmatpush.bf16.msra.mxu0 0
      %652 = vmatpush.bf16.msra.mxu0 0
      %653 = vmatpush.bf16.msra.mxu0 0
      %654 = vmatpush.bf16.msra.mxu0 0
      %655 = vmatpush.bf16.msra.mxu0 0
      %656 = vmatpush.bf16.msra.mxu0 0
      %657 = vmatpush.bf16.msra.mxu0 %v645
      %658 = vmatpush.bf16.msra.mxu0 %v644
      %659 = vmatmul.bf16.gmra.mxu0 %v649
      %v660 = vpop.f32.mrf.mxu0
      %v661 = vadd.f32 %v634, %v660
      %v662 = vpop.f32.mrf.mxu0
      %663 = vdwg.mxu0
      %v664 = vpack.c.bf16 %v270, %v269
      %v665 = vld [vmem:[%s2 + $0xc] sm:$0xf]
      %v666 = vld [vmem:[%s2 + $0x24] sm:$0xf]
      %v667 = vld [vmem:[%s2 + $0x3c] sm:$0xf]
      %v668 = vld [vmem:[%s2 + $0x54] sm:$0xf]
      %v669 = vld [vmem:[%s4 + $0x3] sm:$0x1]
      %v671 = vperm.slane %v669, 0
      %v677 = vunpack.c.l.b16 %v665
      %v678 = vunpack.c.l.b16 %v666
      %v679 = vunpack.c.l.b16 %v667
      %v680 = vunpack.c.l.b16 %v668
      %v681 = vpack.c.b16 %v678, %v677
      %v682 = vpack.c.b16 %v680, %v679
      %v686 = vsel %vm292, %v664, 0
      %688 = vmatpush.bf16.msra.mxu0 0
      %689 = vmatpush.bf16.msra.mxu0 0
      %690 = vmatpush.bf16.msra.mxu0 0
      %691 = vmatpush.bf16.msra.mxu0 0
      %692 = vmatpush.bf16.msra.mxu0 0
      %693 = vmatpush.bf16.msra.mxu0 0
      %694 = vmatpush.bf16.msra.mxu0 %v682
      %695 = vmatpush.bf16.msra.mxu0 %v681
      %696 = vmatmul.bf16.gmra.mxu0 %v686
      %v697 = vpop.f32.mrf.mxu0
      %v698 = vadd.f32 %v671, %v697
      %v699 = vpop.f32.mrf.mxu0
      %v700 = vadd.f32 %v671, %v699
      %701 = vdwg.mxu0
      %v702 = vld [vmem:[%s2 + $0x10] sm:$0xf]
      %v703 = vld [vmem:[%s2 + $0x28] sm:$0xf]
      %v704 = vld [vmem:[%s2 + $0x40] sm:$0xf]
      %v705 = vld [vmem:[%s2 + $0x58] sm:$0xf]
      %v706 = vld [vmem:[%s4 + $0x4] sm:$0x1]
      %v707 = vpack.c.bf16 %v661, %v661
      %v708 = vpack.c.bf16 %v698, %v698
      %v709 = vpack.c.bf16 %v700, %v700
      %v712 = vunpack.c.l.b16 %v708
      %v713 = vunpack.c.l.b16 %v709
      %v714 = vpack.c.b16 %v713, %v712
      %v716 = vsel %vm320, %v707, 0
      %v719 = vsel %vm320, %v714, 0
      %721 = vmatpush.bf16.xpose.msra.mxu0 0
      %722 = vmatpush.bf16.xpose.msra.mxu0 0
      %723 = vmatpush.bf16.xpose.msra.mxu0 0
      %724 = vmatpush.bf16.xpose.msra.mxu0 0
      %725 = vmatpush.bf16.xpose.msra.mxu0 0
      %726 = vmatpush.bf16.xpose.msra.mxu0 0
      %727 = vmatpush.bf16.xpose.msra.mxu0 0
      %728 = vmatpush.bf16.xpose.msra.mxu0 %v719
      %729 = vmatmul.bf16.gmra.mxu0 %v716
      %v730 = vpop.f32.mrf.mxu0
      %v731 = vadd.f32 0.0, %v730
      %v732 = vpop.f32.mrf.mxu0
      %733 = vdwg.mxu0
      %vm734 = vcmask 80896
      %v735 = vsel %vm734, %v731, -inf
      %736 = vmax.xlane.f32.xlu0 %v735
      %v737 = vpop.xlane.xlu0 %736
      %v738 = vsub.f32 %v731, %v737
      %v739 = vmul.f32 %v738, 1.442695
      %v740 = vpow.pop %v739
      %v741 = vsel %vm734, %v740, 0.0
      %742 = vadd.xlane.f32.xlu0 %v741
      %v743 = vpop.xlane.xlu0 %742
      %v744 = vrcp.pop %v743
      %v745 = vmul.f32 %v740, %v744
      %v746 = vpack.c.bf16 %v745, %v745
      %747 = vrot.lane.b32.xlu0 %v714, 96
      %v748 = vpop.permute.xlu0 %747
      %v750 = vsel %vm734, %v746, 0
      %vm752 = vcmask 1044480
      %v754 = vsel %vm752, %v748, 0
      %756 = vmatpush.bf16.msra.mxu0 0
      %757 = vmatpush.bf16.msra.mxu0 0
      %758 = vmatpush.bf16.msra.mxu0 0
      %759 = vmatpush.bf16.msra.mxu0 0
      %760 = vmatpush.bf16.msra.mxu0 0
      %761 = vmatpush.bf16.msra.mxu0 0
      %762 = vmatpush.bf16.msra.mxu0 0
      %763 = vmatpush.bf16.msra.mxu0 %v754
      %764 = vmatmul.bf16.gmra.mxu0 %v750
      %v765 = vpop.f32.mrf.mxu0
      %v766 = vadd.f32 0.0, %v765
      %v767 = vpop.f32.mrf.mxu0
      %768 = vdwg.mxu0
      %v770 = vunpack.c.l.b16 %v707
      %v771 = vpack.c.b16 %v770, %v770
      %772 = vrot.lane.b32.xlu0 %v771, 120
      %v773 = vpop.permute.xlu0 %772
      %774 = vrot.lane.b32.xlu0 %v714, 120
      %v775 = vpop.permute.xlu0 %774
      %v777 = vsel %vm320, %v773, 0
      %v780 = vsel %vm320, %v775, 0
      %782 = vmatpush.bf16.xpose.msra.mxu0 0
      %783 = vmatpush.bf16.xpose.msra.mxu0 0
      %784 = vmatpush.bf16.xpose.msra.mxu0 0
      %785 = vmatpush.bf16.xpose.msra.mxu0 0
      %786 = vmatpush.bf16.xpose.msra.mxu0 0
      %787 = vmatpush.bf16.xpose.msra.mxu0 0
      %788 = vmatpush.bf16.xpose.msra.mxu0 0
      %789 = vmatpush.bf16.xpose.msra.mxu0 %v780
      %790 = vmatmul.bf16.gmra.mxu0 %v777
      %v791 = vpop.f32.mrf.mxu0
      %v792 = vadd.f32 0.0, %v791
      %v793 = vpop.f32.mrf.mxu0
      %794 = vdwg.mxu0
      %v795 = vsel %vm734, %v792, -inf
      %796 = vmax.xlane.f32.xlu0 %v795
      %v797 = vpop.xlane.xlu0 %796
      %v798 = vsub.f32 %v792, %v797
      %v799 = vmul.f32 %v798, 1.442695
      %v800 = vpow.pop %v799
      %v801 = vsel %vm734, %v800, 0.0
      %802 = vadd.xlane.f32.xlu0 %v801
      %v803 = vpop.xlane.xlu0 %802
      %v804 = vrcp.pop %v803
      %v805 = vmul.f32 %v800, %v804
      %v806 = vpack.c.bf16 %v805, %v805
      %807 = vrot.lane.b32.xlu0 %v714, 88
      %v808 = vpop.permute.xlu0 %807
      %v810 = vsel %vm734, %v806, 0
      %v813 = vsel %vm752, %v808, 0
      %815 = vmatpush.bf16.msra.mxu0 0
      %816 = vmatpush.bf16.msra.mxu0 0
      %817 = vmatpush.bf16.msra.mxu0 0
      %818 = vmatpush.bf16.msra.mxu0 0
      %819 = vmatpush.bf16.msra.mxu0 0
      %820 = vmatpush.bf16.msra.mxu0 0
      %821 = vmatpush.bf16.msra.mxu0 0
      %822 = vmatpush.bf16.msra.mxu0 %v813
      %823 = vmatmul.bf16.gmra.mxu0 %v810
      %v824 = vpop.f32.mrf.mxu0
      %v825 = vadd.f32 0.0, %v824
      %v826 = vpop.f32.mrf.mxu0
      %827 = vdwg.mxu0
      %828 = vrot.lane.b32.xlu0 %v771, 112
      %v829 = vpop.permute.xlu0 %828
      %830 = vrot.lane.b32.xlu0 %v714, 112
      %v831 = vpop.permute.xlu0 %830
      %v833 = vsel %vm320, %v829, 0
      %v836 = vsel %vm320, %v831, 0
      %838 = vmatpush.bf16.xpose.msra.mxu0 0
      %839 = vmatpush.bf16.xpose.msra.mxu0 0
      %840 = vmatpush.bf16.xpose.msra.mxu0 0
      %841 = vmatpush.bf16.xpose.msra.mxu0 0
      %842 = vmatpush.bf16.xpose.msra.mxu0 0
      %843 = vmatpush.bf16.xpose.msra.mxu0 0
      %844 = vmatpush.bf16.xpose.msra.mxu0 0
      %845 = vmatpush.bf16.xpose.msra.mxu0 %v836
      %846 = vmatmul.bf16.gmra.mxu0 %v833
      %v847 = vpop.f32.mrf.mxu0
      %v848 = vadd.f32 0.0, %v847
      %v849 = vpop.f32.mrf.mxu0
      %850 = vdwg.mxu0
      %v851 = vsel %vm734, %v848, -inf
      %852 = vmax.xlane.f32.xlu0 %v851
      %v853 = vpop.xlane.xlu0 %852
      %v854 = vsub.f32 %v848, %v853
      %v855 = vmul.f32 %v854, 1.442695
      %v856 = vpow.pop %v855
      %v857 = vsel %vm734, %v856, 0.0
      %858 = vadd.xlane.f32.xlu0 %v857
      %v859 = vpop.xlane.xlu0 %858
      %v860 = vrcp.pop %v859
      %v861 = vmul.f32 %v856, %v860
      %v862 = vpack.c.bf16 %v861, %v861
      %863 = vrot.lane.b32.xlu0 %v714, 80
      %v864 = vpop.permute.xlu0 %863
      %v866 = vsel %vm734, %v862, 0
      %v869 = vsel %vm752, %v864, 0
      %871 = vmatpush.bf16.msra.mxu0 0
      %872 = vmatpush.bf16.msra.mxu0 0
      %873 = vmatpush.bf16.msra.mxu0 0
      %874 = vmatpush.bf16.msra.mxu0 0
      %875 = vmatpush.bf16.msra.mxu0 0
      %876 = vmatpush.bf16.msra.mxu0 0
      %877 = vmatpush.bf16.msra.mxu0 0
      %878 = vmatpush.bf16.msra.mxu0 %v869
      %879 = vmatmul.bf16.gmra.mxu0 %v866
      %v880 = vpop.f32.mrf.mxu0
      %v881 = vadd.f32 0.0, %v880
      %v882 = vpop.f32.mrf.mxu0
      %883 = vdwg.mxu0
      %884 = vrot.lane.b32.xlu0 %v771, 104
      %v885 = vpop.permute.xlu0 %884
      %886 = vrot.lane.b32.xlu0 %v714, 104
      %v887 = vpop.permute.xlu0 %886
      %v889 = vsel %vm320, %v885, 0
      %v892 = vsel %vm320, %v887, 0
      %894 = vmatpush.bf16.xpose.msra.mxu0 0
      %895 = vmatpush.bf16.xpose.msra.mxu0 0
      %896 = vmatpush.bf16.xpose.msra.mxu0 0
      %897 = vmatpush.bf16.xpose.msra.mxu0 0
      %898 = vmatpush.bf16.xpose.msra.mxu0 0
      %899 = vmatpush.bf16.xpose.msra.mxu0 0
      %900 = vmatpush.bf16.xpose.msra.mxu0 0
      %901 = vmatpush.bf16.xpose.msra.mxu0 %v892
      %902 = vmatmul.bf16.gmra.mxu0 %v889
      %v903 = vpop.f32.mrf.mxu0
      %v904 = vadd.f32 0.0, %v903
      %v905 = vpop.f32.mrf.mxu0
      %906 = vdwg.mxu0
      %v907 = vsel %vm734, %v904, -inf
      %908 = vmax.xlane.f32.xlu0 %v907
      %v909 = vpop.xlane.xlu0 %908
      %v910 = vsub.f32 %v904, %v909
      %v911 = vmul.f32 %v910, 1.442695
      %v912 = vpow.pop %v911
      %v913 = vsel %vm734, %v912, 0.0
      %914 = vadd.xlane.f32.xlu0 %v913
      %v915 = vpop.xlane.xlu0 %914
      %v916 = vrcp.pop %v915
      %v917 = vmul.f32 %v912, %v916
      %v918 = vpack.c.bf16 %v917, %v917
      %919 = vrot.lane.b32.xlu0 %v714, 72
      %v920 = vpop.permute.xlu0 %919
      %v922 = vsel %vm734, %v918, 0
      %v925 = vsel %vm752, %v920, 0
      %927 = vmatpush.bf16.msra.mxu0 0
      %928 = vmatpush.bf16.msra.mxu0 0
      %929 = vmatpush.bf16.msra.mxu0 0
      %930 = vmatpush.bf16.msra.mxu0 0
      %931 = vmatpush.bf16.msra.mxu0 0
      %932 = vmatpush.bf16.msra.mxu0 0
      %933 = vmatpush.bf16.msra.mxu0 0
      %934 = vmatpush.bf16.msra.mxu0 %v925
      %935 = vmatmul.bf16.gmra.mxu0 %v922
      %v936 = vpop.f32.mrf.mxu0
      %v937 = vadd.f32 0.0, %v936
      %v938 = vpop.f32.mrf.mxu0
      %939 = vdwg.mxu0
      %941 = vrot.lane.b32.xlu0 %v825, 8
      %v942 = vpop.permute.xlu0 %941
      %945 = vrot.lane.b32.xlu0 %v881, 16
      %v946 = vpop.permute.xlu0 %945
      %949 = vrot.lane.b32.xlu0 %v937, 24
      %v950 = vpop.permute.xlu0 %949
      %v952 = vsel %vm320, %v766, %v942
      %v953 = vsel %vm555, %v952, %v946
      %v954 = vsel %vm557, %v953, %v950
      %v955 = vpack.c.bf16 %v954, %v954
      %v957 = vperm.slane %v706, 0
      %v963 = vunpack.c.l.b16 %v702
      %v964 = vunpack.c.l.b16 %v703
      %v965 = vunpack.c.l.b16 %v704
      %v966 = vunpack.c.l.b16 %v705
      %v967 = vpack.c.b16 %v964, %v963
      %v968 = vpack.c.b16 %v966, %v965
      %v972 = vsel %vm292, %v955, 0
      %974 = vmatpush.bf16.msra.mxu0 0
      %975 = vmatpush.bf16.msra.mxu0 0
      %976 = vmatpush.bf16.msra.mxu0 0
      %977 = vmatpush.bf16.msra.mxu0 0
      %978 = vmatpush.bf16.msra.mxu0 0
      %979 = vmatpush.bf16.msra.mxu0 0
      %980 = vmatpush.bf16.msra.mxu0 %v968
      %981 = vmatpush.bf16.msra.mxu0 %v967
      %982 = vmatmul.bf16.gmra.mxu0 %v972
      %v983 = vpop.f32.mrf.mxu0
      %v984 = vadd.f32 %v957, %v983
      %v985 = vpop.f32.mrf.mxu0
      %986 = vdwg.mxu0
      %v987 = vadd.f32 %v626, %v984
      %v988 = vld [vmem:[%s5 + $0x2] sm:$0x1]
      %v989 = vld [vmem:[%s5 + $0x3] sm:$0x1]
      %v990 = vsel %vm292, %v987, 0.0
      %991 = vadd.xlane.f32.xlu0 %v990
      %v992 = vpop.xlane.xlu0 %991
      %v993 = vmul.f32 %v992, %v603
      %v994 = vsub.f32 %v987, %v993
      %v995 = vmul.f32 %v994, %v994
      %v996 = vsel %vm292, %v995, 0.0
      %997 = vadd.xlane.f32.xlu0 %v996
      %v998 = vpop.xlane.xlu0 %997
      %v999 = vmul.f32 %v998, %v603
      %v1000 = vadd.f32 %v999, 1e-05
      %v1001 = vrsqrt.pop %v1000
      %v1002 = vmul.f32 %v1001, %v1000
      %v1003 = vmul.f32 %v1002, %v1001
      %v1004 = vmul.f32 0.5, %v1003
      %v1005 = vsub.f32 1.5, %v1004
      %v1006 = vmul.f32 %v1001, %v1005
      %vm1007 = vweird.f32 %v1000
      %vm1008 = vweird.f32 %v1001
      %vm1009 = vmor %vm1007, %vm1008
      %v1010 = vsel %vm1009, %v1001, %v1006
      %v1011 = vmul.f32 %v994, %v1010
      %v1012 = vperm.slane %v988, 0
      %v1013 = vmul.f32 %v1011, %v1012
      %v1014 = vperm.slane %v989, 0
      %v1015 = vadd.f32 %v1013, %v1014
      %v1016 = vpack.c.bf16 %v1015, %v1015
      %v1017 = vld [vmem:[%s2 + $0x14] sm:$0xf]
      %v1018 = vld [vmem:[%s2 + $0x2c] sm:$0xf]
      %v1019 = vld [vmem:[%s2 + $0x44] sm:$0xf]
      %v1020 = vld [vmem:[%s2 + $0x5c] sm:$0xf]
      %v1021 = vld [vmem:[%s4 + $0x5] sm:$0x1]
      %v1023 = vperm.slane %v1021, 0
      %v1029 = vunpack.c.l.b16 %v1017
      %v1030 = vunpack.c.l.b16 %v1018
      %v1031 = vunpack.c.l.b16 %v1019
      %v1032 = vunpack.c.l.b16 %v1020
      %v1033 = vpack.c.b16 %v1030, %v1029
      %v1034 = vpack.c.b16 %v1032, %v1031
      %v1038 = vsel %vm292, %v1016, 0
      %1040 = vmatpush.bf16.msra.mxu0 0
      %1041 = vmatpush.bf16.msra.mxu0 0
      %1042 = vmatpush.bf16.msra.mxu0 0
      %1043 = vmatpush.bf16.msra.mxu0 0
      %1044 = vmatpush.bf16.msra.mxu0 0
      %1045 = vmatpush.bf16.msra.mxu0 0
      %1046 = vmatpush.bf16.msra.mxu0 %v1034
      %1047 = vmatpush.bf16.msra.mxu0 %v1033
      %1048 = vmatmul.bf16.gmra.mxu0 %v1038
      %v1049 = vpop.f32.mrf.mxu0
      %v1050 = vadd.f32 %v1023, %v1049
      %v1051 = vpop.f32.mrf.mxu0
      %1052 = vdwg.mxu0
      %v1053 = vmax.f32 %v1050, 0.0
      %v1054 = vpack.c.bf16 %v1053, %v1053
      %v1055 = vld [vmem:[%s3] sm:$0xf]
      %v1056 = vld [vmem:[%s3 + $0x4] sm:$0xf]
      %v1057 = vld [vmem:[%s3 + $0x8] sm:$0xf]
      %v1058 = vld [vmem:[%s3 + $0xc] sm:$0xf]
      %v1059 = vld [vmem:[%s3 + $0x10] sm:$0xf]
      %v1060 = vld [vmem:[%s3 + $0x14] sm:$0xf]
      %v1061 = vld [vmem:[%s3 + $0x18] sm:$0xf]
      %v1062 = vld [vmem:[%s3 + $0x1c] sm:$0xf]
      %v1063 = vld [vmem:[%s4 + $0x6] sm:$0x1]
      %v1065 = vperm.slane %v1063, 0
      %v1075 = vunpack.c.l.b16 %v1055
      %v1076 = vunpack.c.l.b16 %v1056
      %v1077 = vunpack.c.l.b16 %v1057
      %v1078 = vunpack.c.l.b16 %v1058
      %v1079 = vunpack.c.l.b16 %v1059
      %v1080 = vunpack.c.l.b16 %v1060
      %v1081 = vunpack.c.l.b16 %v1061
      %v1082 = vunpack.c.l.b16 %v1062
      %v1083 = vpack.c.b16 %v1076, %v1075
      %v1084 = vpack.c.b16 %v1078, %v1077
      %v1085 = vpack.c.b16 %v1080, %v1079
      %v1086 = vpack.c.b16 %v1082, %v1081
      %vm1091 = vcmask 523264
      %v1093 = vsel %vm1091, %v1054, 0
      %1095 = vmatpush.bf16.msra.mxu0 0
      %1096 = vmatpush.bf16.msra.mxu0 0
      %1097 = vmatpush.bf16.msra.mxu0 0
      %1098 = vmatpush.bf16.msra.mxu0 0
      %1099 = vmatpush.bf16.msra.mxu0 %v1086
      %1100 = vmatpush.bf16.msra.mxu0 %v1085
      %1101 = vmatpush.bf16.msra.mxu0 %v1084
      %1102 = vmatpush.bf16.msra.mxu0 %v1083
      %1103 = vmatmul.bf16.gmra.mxu0 %v1093
      %v1104 = vpop.f32.mrf.mxu0
      %v1105 = vadd.f32 %v1065, %v1104
      %v1106 = vpop.f32.mrf.mxu0
      %1107 = vdwg.mxu0
      %v1108 = vadd.f32 %v1015, %v1105
      %v1109 = vld [vmem:[%s5 + $0x4] sm:$0x1]
      %v1110 = vld [vmem:[%s5 + $0x5] sm:$0x1]
      %v1111 = vsel %vm292, %v1108, 0.0
      %1112 = vadd.xlane.f32.xlu0 %v1111
      %v1113 = vpop.xlane.xlu0 %1112
      %v1114 = vmul.f32 %v1113, %v603
      %v1115 = vsub.f32 %v1108, %v1114
      %v1116 = vmul.f32 %v1115, %v1115
      %v1117 = vsel %vm292, %v1116, 0.0
      %1118 = vadd.xlane.f32.xlu0 %v1117
      %v1119 = vpop.xlane.xlu0 %1118
      %v1120 = vmul.f32 %v1119, %v603
      %v1121 = vadd.f32 %v1120, 1e-05
      %v1122 = vrsqrt.pop %v1121
      %v1123 = vmul.f32 %v1122, %v1121
      %v1124 = vmul.f32 %v1123, %v1122
      %v1125 = vmul.f32 0.5, %v1124
      %v1126 = vsub.f32 1.5, %v1125
      %v1127 = vmul.f32 %v1122, %v1126
      %vm1128 = vweird.f32 %v1121
      %vm1129 = vweird.f32 %v1122
      %vm1130 = vmor %vm1128, %vm1129
      %v1131 = vsel %vm1130, %v1122, %v1127
      %v1132 = vmul.f32 %v1115, %v1131
      %v1133 = vperm.slane %v1109, 0
      %v1134 = vmul.f32 %v1132, %v1133
      %v1135 = vperm.slane %v1110, 0
      %v1136 = vadd.f32 %v1134, %v1135
      %1137 = vst.msk [vmem:[%s266] sm:$0xff] %vm292, %v1136
      %p1138 = scmp.lt.s32.totalorder %s17, 1
      %s1139 = scalar_select %p1138, %s17, 1
      %s1140 = smul.addr %s1139, 8
      %s1141 = scalar_lea.vmem %s6, %s1140
      // Predicated region
      $region45: #{transformer_decoder_layer.1} parent=43 // pred_check
        %p1142 = pneg %p171
      $region46: #{transformer_decoder_layer.1} parent=43 // pred_check_branch
        %1144 = sbr.rel (%p1142) target = $region48
      $region47: #{transformer_decoder_layer.1} parent=43 // pred_region
        _
      $region48: #{transformer_decoder_layer.1} parent=43 // pred_fallthru
        _
    $region44: #{transformer_decoder_layer.1} parent=5 // pred_fallthru
      _
    %p1145 = scmp.le.s32.totalorder 2, %s12
    // Predicated region
    $region49: #{transformer_decoder_layer.1} parent=5 // pred_check
      %p1146 = pneg %p1145
    $region50: #{transformer_decoder_layer.1} parent=5 // pred_check_branch
      %1148 = sbr.rel (%p1146) target = $region52
    $region51: #{transformer_decoder_layer.1} parent=5 // pred_region
      %s1149 = ssub.s32 %s12, 2
      // Predicated region
      $region53: #{transformer_decoder_layer.1} parent=51 // pred_check
        %p1150 = pneg %p177
      $region54: #{transformer_decoder_layer.1} parent=51 // pred_check_branch
        %1152 = sbr.rel (%p1150) target = $region56
      $region55: #{transformer_decoder_layer.1} parent=51 // pred_region
        %p1153 = scmp.lt.s32.totalorder %s18, 1
        %s1154 = scalar_select %p1153, %s18, 1
        %s1155 = smul.addr %s1154, 8
        %s1156 = scalar_lea.vmem %s6, %s1155
      $region56: #{transformer_decoder_layer.1} parent=51 // pred_fallthru
        _
    $region52: #{transformer_decoder_layer.1} parent=5 // pred_fallthru
      _
  $region6: #{transformer_decoder_layer.1} parent=0 // loop_footer
    %s16 = sadd.s32 1, %s12
  $region7: #{transformer_decoder_layer.1} parent=0 // loop_footer_branch
    %11 = sbr.rel target = $region3
  $region8: #{transformer_decoder_layer.1} parent=0 // loop_exit
    _

</llo_original>
